<compile_context>
chip_gen: v5e
topology: v5e:2x2
jax: 0.10.0
libtpu: 0.0.40
codegen_flags: <defaults>
</compile_context>

<pallas_src>
import functools

import jax
import jax.numpy as jnp
from jax.experimental import pallas as pl
from jax.experimental.pallas import tpu as pltpu


VMEM_LIMIT = 48 * 1024 * 1024  # explicit scoped-VMEM budget, safe on v5e/v6e/v7x


# ----------------------------------------------------------------------------
# Tiling helpers
# ----------------------------------------------------------------------------
def _pick_tile(dim, pref, align):
    """Largest tile t <= pref with dim % t == 0 and t % align == 0, else dim."""
    if dim <= pref:
        return dim
    t = (pref // align) * align
    while t >= align:
        if dim % t == 0:
            return t
        t -= align
    return dim


def _pick_tk(K):
    """K tile covering K in 1-2 passes, preferring multiples of 256 (v6e/v7x MXU)."""
    if K <= 1536:
        return K
    for t in (1536, 1280, 1024, 768, 512, 256):
        if K % t == 0:
            return t
    t = ((K // 2) // 128) * 128
    while t >= 128:
        if K % t == 0:
            return t
        t -= 128
    return K


# ----------------------------------------------------------------------------
# Kernels
# ----------------------------------------------------------------------------
def _gelu(x):
    # GPT-2 tanh GELU (see TODO above re: exact erf variant).
    c = 0.7978845608028654  # sqrt(2/pi)
    return 0.5 * x * (1.0 + jnp.tanh(c * (x + 0.044715 * x * x * x)))


def _linear_kernel(*refs, residual):
    # Canonical tiled matmul with K-accumulation; weight already (K, N) bf16.
    if residual:
        x_ref, w_ref, b_ref, r_ref, o_ref, acc_ref = refs
    else:
        x_ref, w_ref, b_ref, o_ref, acc_ref = refs
        r_ref = None
    k = pl.program_id(2)

    @pl.when(k == 0)
    def _():
        acc_ref[...] = jnp.zeros_like(acc_ref)

    acc_ref[...] += jnp.dot(x_ref[...].astype(jnp.bfloat16), w_ref[...],
                            preferred_element_type=jnp.float32)

    @pl.when(k == pl.num_programs(2) - 1)
    def _():
        out = acc_ref[...] + b_ref[...]
        if residual:
            out = out + r_ref[...].astype(jnp.float32)
        o_ref[...] = out.astype(o_ref.dtype)


def _ln_linear_kernel(x_ref, g_ref, bt_ref, w_ref, b_ref, o_ref, h_sc, *, gelu):
    # Fused LayerNorm -> matmul (+GELU).  LN is computed once per row tile
    # (j == 0) and cached in a bf16 VMEM scratch, reused across all N tiles.
    j = pl.program_id(1)

    @pl.when(j == 0)
    def _():
        x = x_ref[...].astype(jnp.float32)
        mean = jnp.mean(x, axis=-1, keepdims=True)
        xc = x - mean
        var = jnp.mean(xc * xc, axis=-1, keepdims=True)
        h = xc * jax.lax.rsqrt(var + 1e-5) * g_ref[...] + bt_ref[...]
        h_sc[...] = h.astype(jnp.bfloat16)

    acc = jnp.dot(h_sc[...], w_ref[...], preferred_element_type=jnp.float32)
    acc = acc + b_ref[...]
    if gelu:
        acc = _gelu(acc)
    o_ref[...] = acc.astype(o_ref.dtype)


def _ln_lm_head_ce_kernel(x_ref, g_ref, bt_ref, w_ref, tgt_ref,
                          logits_ref, nll_ref, valid_ref,
                          h_sc, m_sc, l_sc, t_sc):
    # Final LN (cached) -> tied lm_head matmul, with the online-logsumexp
    # cross-entropy fused into the vocab sweep (ignore_index = -1).
    j = pl.program_id(1)

    @pl.when(j == 0)
    def _():
        x = x_ref[...].astype(jnp.float32)
        mean = jnp.mean(x, axis=-1, keepdims=True)
        xc = x - mean
        var = jnp.mean(xc * xc, axis=-1, keepdims=True)
        h_sc[...] = (xc * jax.lax.rsqrt(var + 1e-5) * g_ref[...]
                     + bt_ref[...]).astype(jnp.bfloat16)
        m_sc[...] = jnp.full_like(m_sc, -jnp.inf)
        l_sc[...] = jnp.zeros_like(l_sc)
        t_sc[...] = jnp.zeros_like(t_sc)

    logits = jnp.dot(h_sc[...], w_ref[...], preferred_element_type=jnp.float32)
    logits_ref[...] = logits                      # user-facing logits stay f32

    tm, tv = logits.shape
    tgt = tgt_ref[...]                            # (tm, 1) int32
    col = jax.lax.broadcasted_iota(jnp.int32, (tm, tv), 1) + j * tv

    m_new = jnp.maximum(m_sc[...], jnp.max(logits, axis=-1, keepdims=True))
    alpha = jnp.exp(m_sc[...] - m_new)
    l_sc[...] = alpha * l_sc[...] + jnp.sum(jnp.exp(logits - m_new),
                                            axis=-1, keepdims=True)
    m_sc[...] = m_new
    t_sc[...] += jnp.sum(jnp.where(col == tgt, logits, 0.0),
                         axis=-1, keepdims=True)

    @pl.when(j == pl.num_programs(1) - 1)
    def _():
        valid = (tgt >= 0).astype(jnp.float32)
        nll_ref[...] = (m_sc[...] + jnp.log(l_sc[...]) - t_sc[...]) * valid
        valid_ref[...] = valid


def _attn_kernel(qkv_ref, o_ref, *, n_head):
    # qkv block: (1, T, 3C) bf16; output block: (n_head, T, hs) bf16 (head-major,
    # no lane concatenate).  Scores/softmax stay f32 (stable on all generations).
    qkv = qkv_ref[0]                               # (T, 3C)
    T, C3 = qkv.shape
    C = C3 // 3
    hs = C // n_head
    scale = 1.0 / (hs ** 0.5)
    row = jax.lax.broadcasted_iota(jnp.int32, (T, 1), 0)
    col = jax.lax.broadcasted_iota(jnp.int32, (1, T), 1)
    causal = col <= row                            # (T, T) bool via broadcast
    for h in range(n_head):
        q = qkv[:, h * hs:(h + 1) * hs]
        k = qkv[:, C + h * hs:C + (h + 1) * hs]
        v = qkv[:, 2 * C + h * hs:2 * C + (h + 1) * hs]
        att = jax.lax.dot_general(q, k, (((1,), (1,)), ((), ())),
                                  preferred_element_type=jnp.float32) * scale
        att = jnp.where(causal, att, jnp.float32(-1e30))
        att = att - jnp.max(att, axis=-1, keepdims=True)
        p = jnp.exp(att)
        p = p / jnp.sum(p, axis=-1, keepdims=True)   # exact divide (softmax sums to 1)
        out = jnp.dot(p.astype(jnp.bfloat16), v, preferred_element_type=jnp.float32)
        o_ref[h] = out.astype(o_ref.dtype)


def _headproj_kernel(y_ref, w_ref, b_ref, r_ref, o_ref, acc_ref):
    # Attention projection with the head merge folded in: reduce over heads
    # (grid axis 1, "arbitrary") and fuse bias + residual at the last head.
    h = pl.program_id(1)

    @pl.when(h == 0)
    def _():
        acc_ref[...] = jnp.zeros_like(acc_ref)

    acc_ref[...] += jnp.dot(y_ref[0], w_ref[0], preferred_element_type=jnp.float32)

    @pl.when(h == pl.num_programs(1) - 1)
    def _():
        o_ref[...] = (acc_ref[...] + b_ref[...]
                      + r_ref[...].astype(jnp.float32)).astype(o_ref.dtype)


def _l1_kernel(w_ref, o_ref):
    # Tiled |w| reduction into a (1,1) resident accumulator output.
    @pl.when(pl.program_id(0) == 0)
    def _():
        o_ref[...] = jnp.zeros_like(o_ref)
    o_ref[...] += jnp.sum(jnp.abs(w_ref[...].astype(jnp.float32)))


# ----------------------------------------------------------------------------
# Wrappers
# ----------------------------------------------------------------------------
def pallas_linear(x, wT, b, residual=None, out_dtype=jnp.float32):
    """x: (M, K).  wT: (K, N) bf16 (pre-transposed at init).  b: (N,)."""
    M, K = x.shape
    N = wT.shape[1]
    tm = _pick_tile(M, 512, 16)
    tn = _pick_tile(N, 512, 128)
    tk = _pick_tk(K)
    in_specs = [
        pl.BlockSpec((tm, tk), lambda i, j, k: (i, k)),
        pl.BlockSpec((tk, tn), lambda i, j, k: (k, j)),
        pl.BlockSpec((1, tn), lambda i, j, k: (0, j)),
    ]
    args = [x, wT, b.reshape(1, N)]
    if residual is not None:
        in_specs.append(pl.BlockSpec((tm, tn), lambda i, j, k: (i, j)))
        args.append(residual)
    return pl.pallas_call(
        functools.partial(_linear_kernel, residual=residual is not None),
        out_shape=jax.ShapeDtypeStruct((M, N), out_dtype),
        grid=(M // tm, N // tn, K // tk),
        in_specs=in_specs,
        out_specs=pl.BlockSpec((tm, tn), lambda i, j, k: (i, j)),
        scratch_shapes=[pltpu.VMEM((tm, tn), jnp.float32)],
        compiler_params=pltpu.CompilerParams(
            dimension_semantics=("parallel", "parallel", "arbitrary"),
            vmem_limit_bytes=VMEM_LIMIT),
    )(*args)


def pallas_ln_linear(x, gamma, beta, wT, b, *, gelu=False, out_dtype=jnp.bfloat16):
    """Fused LayerNorm + linear.  x: (M, K), wT: (K, N) bf16, full K per block."""
    M, K = x.shape
    N = wT.shape[1]
    tm = _pick_tile(M, 512, 16)
    tn = _pick_tile(N, 512, 128)
    return pl.pallas_call(
        functools.partial(_ln_linear_kernel, gelu=gelu),
        out_shape=jax.ShapeDtypeStruct((M, N), out_dtype),
        grid=(M // tm, N // tn),
        in_specs=[
            pl.BlockSpec((tm, K), lambda i, j: (i, 0)),
            pl.BlockSpec((1, K), lambda i, j: (0, 0)),
            pl.BlockSpec((1, K), lambda i, j: (0, 0)),
            pl.BlockSpec((K, tn), lambda i, j: (0, j)),
            pl.BlockSpec((1, tn), lambda i, j: (0, j)),
        ],
        out_specs=pl.BlockSpec((tm, tn), lambda i, j: (i, j)),
        scratch_shapes=[pltpu.VMEM((tm, K), jnp.bfloat16)],   # cached LN output
        compiler_params=pltpu.CompilerParams(
            dimension_semantics=("parallel", "arbitrary"),    # j must not split
            vmem_limit_bytes=VMEM_LIMIT),
    )(x, gamma.reshape(1, K), beta.reshape(1, K), wT, b.reshape(1, N))


def pallas_lm_head_ce(x, gamma, beta, wT, targets):
    """Final LN + tied lm_head + fused mean cross-entropy (ignore_index=-1)."""
    M, K = x.shape
    V = wT.shape[1]
    tm = _pick_tile(M, 512, 16)
    tv = _pick_tile(V, 512, 128)
    tgt = targets.reshape(M, 1).astype(jnp.int32)
    logits, nll, valid = pl.pallas_call(
        _ln_lm_head_ce_kernel,
        out_shape=(jax.ShapeDtypeStruct((M, V), jnp.float32),
                   jax.ShapeDtypeStruct((M, 1), jnp.float32),
                   jax.ShapeDtypeStruct((M, 1), jnp.float32)),
        grid=(M // tm, V // tv),
        in_specs=[
            pl.BlockSpec((tm, K), lambda i, j: (i, 0)),
            pl.BlockSpec((1, K), lambda i, j: (0, 0)),
            pl.BlockSpec((1, K), lambda i, j: (0, 0)),
            pl.BlockSpec((K, tv), lambda i, j: (0, j)),
            pl.BlockSpec((tm, 1), lambda i, j: (i, 0)),
        ],
        out_specs=(pl.BlockSpec((tm, tv), lambda i, j: (i, j)),
                   pl.BlockSpec((tm, 1), lambda i, j: (i, 0)),
                   pl.BlockSpec((tm, 1), lambda i, j: (i, 0))),
        scratch_shapes=[pltpu.VMEM((tm, K), jnp.bfloat16),
                        pltpu.VMEM((tm, 1), jnp.float32),
                        pltpu.VMEM((tm, 1), jnp.float32),
                        pltpu.VMEM((tm, 1), jnp.float32)],
        compiler_params=pltpu.CompilerParams(
            dimension_semantics=("parallel", "arbitrary"),
            vmem_limit_bytes=VMEM_LIMIT),
    )(x, gamma.reshape(1, K), beta.reshape(1, K), wT, tgt)
    loss = jnp.sum(nll) / jnp.maximum(jnp.sum(valid), 1.0)   # tiny scalar glue
    return logits, loss


def pallas_causal_attention(qkv, n_head):
    """qkv: (B, T, 3C) bf16 -> head-major (n_head, B*T, hs) bf16."""
    B, T, C3 = qkv.shape
    C = C3 // 3
    hs = C // n_head
    return pl.pallas_call(
        functools.partial(_attn_kernel, n_head=n_head),
        out_shape=jax.ShapeDtypeStruct((n_head, B * T, hs), jnp.bfloat16),
        grid=(B,),
        in_specs=[pl.BlockSpec((1, T, C3), lambda b: (b, 0, 0))],
        out_specs=pl.BlockSpec((n_head, T, hs), lambda b: (0, b, 0)),
        compiler_params=pltpu.CompilerParams(
            dimension_semantics=("parallel",),
            vmem_limit_bytes=VMEM_LIMIT),
    )(qkv)


def pallas_head_proj(y, w_heads, b, residual):
    """Attention projection reducing over heads.
    y: (n_head, M, hs) bf16; w_heads: (n_head, hs, C) bf16; residual: (M, C) f32."""
    n_head, M, hs = y.shape
    C = w_heads.shape[-1]
    tm = _pick_tile(M, 512, 16)
    return pl.pallas_call(
        _headproj_kernel,
        out_shape=jax.ShapeDtypeStruct((M, C), jnp.float32),
        grid=(M // tm, n_head),
        in_specs=[
            pl.BlockSpec((1, tm, hs), lambda i, h: (h, i, 0)),
            pl.BlockSpec((1, hs, C), lambda i, h: (h, 0, 0)),
            pl.BlockSpec((1, C), lambda i, h: (0, 0)),
            pl.BlockSpec((tm, C), lambda i, h: (i, 0)),
        ],
        out_specs=pl.BlockSpec((tm, C), lambda i, h: (i, 0)),
        scratch_shapes=[pltpu.VMEM((tm, C), jnp.float32)],
        compiler_params=pltpu.CompilerParams(
            dimension_semantics=("parallel", "arbitrary"),
            vmem_limit_bytes=VMEM_LIMIT),
    )(y, w_heads, b.reshape(1, C), residual)


def pallas_l1_sum(w):
    """sum(|w|) via a row-tiled streaming reduction."""
    R, C = w.shape
    tr = _pick_tile(R, 512, 8)
    out = pl.pallas_call(
        _l1_kernel,
        out_shape=jax.ShapeDtypeStruct((1, 1), jnp.float32),
        grid=(R // tr,),
        in_specs=[pl.BlockSpec((tr, C), lambda i: (i, 0))],
        out_specs=pl.BlockSpec((1, 1), lambda i: (0, 0)),
        compiler_params=pltpu.CompilerParams(
            dimension_semantics=("arbitrary",),
            vmem_limit_bytes=VMEM_LIMIT),
    )(w)
    return out[0, 0]


# ----------------------------------------------------------------------------
# Small GPT model (the wrapped `model`) built from the kernels above
# ----------------------------------------------------------------------------
def init_gpt_params(key, *, vocab_size, block_size, n_layer, n_head, n_embd):
    std = 0.02
    keys = jax.random.split(key, 2 + 4 * n_layer)
    ki = iter(keys)
    p = {
        "wte": jax.random.normal(next(ki), (vocab_size, n_embd), jnp.float32) * std,
        "wpe": jax.random.normal(next(ki), (block_size, n_embd), jnp.float32) * std,
        "lnf_w": jnp.ones((n_embd,), jnp.float32),
        "lnf_b": jnp.zeros((n_embd,), jnp.float32),
        "blocks": [],
    }
    for _ in range(n_layer):
        blk = {
            "ln1_w": jnp.ones((n_embd,), jnp.float32),
            "ln1_b": jnp.zeros((n_embd,), jnp.float32),
            # PyTorch nn.Linear layout: (out_features, in_features)
            "c_attn_w": jax.random.normal(next(ki), (3 * n_embd, n_embd), jnp.float32) * std,
            "c_attn_b": jnp.zeros((3 * n_embd,), jnp.float32),
            "c_proj_w": jax.random.normal(next(ki), (n_embd, n_embd), jnp.float32) * std,
            "c_proj_b": jnp.zeros((n_embd,), jnp.float32),
            "ln2_w": jnp.ones((n_embd,), jnp.float32),
            "ln2_b": jnp.zeros((n_embd,), jnp.float32),
            "fc_w": jax.random.normal(next(ki), (4 * n_embd, n_embd), jnp.float32) * std,
            "fc_b": jnp.zeros((4 * n_embd,), jnp.float32),
            "mproj_w": jax.random.normal(next(ki), (n_embd, 4 * n_embd), jnp.float32) * std,
            "mproj_b": jnp.zeros((n_embd,), jnp.float32),
        }
        p["blocks"].append(blk)
    return p


def prepare_compute_params(params, n_head):
    """One-time conversion of master f32 (out,in) weights into bf16 (K,N) copies."""
    V, C = params["wte"].shape
    hs = C // n_head
    cp = {
        "wte": params["wte"],
        "wpe": params["wpe"],
        "lnf_w": params["lnf_w"], "lnf_b": params["lnf_b"],
        "lm_head_wT": params["wte"].T.astype(jnp.bfloat16),           # (C, V) tied
        "blocks": [],
    }
    for blk in params["blocks"]:
        cp["blocks"].append({
            "ln1_w": blk["ln1_w"], "ln1_b": blk["ln1_b"],
            "ln2_w": blk["ln2_w"], "ln2_b": blk["ln2_b"],
            "c_attn_wT": blk["c_attn_w"].T.astype(jnp.bfloat16),      # (C, 3C)
            "c_attn_b": blk["c_attn_b"],
            # head-split proj weight for the head-reduction kernel: (n_head, hs, C)
            "c_proj_wh": blk["c_proj_w"].T.reshape(n_head, hs, C).astype(jnp.bfloat16),
            "c_proj_b": blk["c_proj_b"],
            "fc_wT": blk["fc_w"].T.astype(jnp.bfloat16),              # (C, 4C)
            "fc_b": blk["fc_b"],
            "mproj_wT": blk["mproj_w"].T.astype(jnp.bfloat16),        # (4C, C)
            "mproj_b": blk["mproj_b"],
        })
    return cp


def gpt_forward(cp, idx, targets=None, *, n_head):
    B, T = idx.shape
    V, C = cp["wte"].shape

    tok = jnp.take(cp["wte"], idx, axis=0)                 # embedding gather (JAX glue)
    pos = cp["wpe"][:T][None, :, :]
    x = (tok + pos).astype(jnp.float32).reshape(B * T, C)  # residual stream stays f32

    for blk in cp["blocks"]:
        # attention sub-block: fused LN -> qkv (bf16), attention, head-reduced proj + residual
        qkv = pallas_ln_linear(x, blk["ln1_w"], blk["ln1_b"],
                               blk["c_attn_wT"], blk["c_attn_b"],
                               out_dtype=jnp.bfloat16)                     # (B*T, 3C)
        y = pallas_causal_attention(qkv.reshape(B, T, 3 * C), n_head)      # (H, B*T, hs)
        x = pallas_head_proj(y, blk["c_proj_wh"], blk["c_proj_b"], x)      # (B*T, C) f32

        # MLP sub-block: fused LN -> fc+GELU (bf16), proj + residual
        h = pallas_ln_linear(x, blk["ln2_w"], blk["ln2_b"],
                             blk["fc_wT"], blk["fc_b"], gelu=True,
                             out_dtype=jnp.bfloat16)                       # (B*T, 4C)
        x = pallas_linear(h, blk["mproj_wT"], blk["mproj_b"], residual=x)  # (B*T, C) f32

    if targets is not None:
        logits, loss = pallas_lm_head_ce(x, cp["lnf_w"], cp["lnf_b"],
                                         cp["lm_head_wT"], targets.reshape(B * T))
    else:
        logits = pallas_ln_linear(x, cp["lnf_w"], cp["lnf_b"], cp["lm_head_wT"],
                                  jnp.zeros((V,), jnp.float32),
                                  out_dtype=jnp.float32)
        loss = None
    return logits.reshape(B, T, V), loss


def _l1_cost(weights):
    total_params = sum(int(w.size) for w in weights)
    total_l1 = jnp.float32(0.0)
    for w in weights:
        total_l1 = total_l1 + pallas_l1_sum(w)
    return total_l1 / total_params


# ----------------------------------------------------------------------------
# L1RegularizedGPT wrapper (forward + get_cost), mirroring the PyTorch module
# ----------------------------------------------------------------------------
class L1RegularizedGPT:
    def __init__(self, params, n_head, l1_scale=0.0):
        self.params = params              # master f32 params (PyTorch layout)
        self.n_head = n_head
        self.l1_scale = l1_scale
        # bf16 (K, N) compute copies built ONCE (no per-step weight re-casts)
        self.compute_params = prepare_compute_params(params, n_head)
        self._fwd = jax.jit(functools.partial(gpt_forward, n_head=n_head))
        self._cost_fn = jax.jit(_l1_cost)

    def forward(self, idx, targets=None):
        logits, loss = self._fwd(self.compute_params, idx, targets)
        return (logits, loss)

    __call__ = forward

    def get_cost(self):
        """L1 cost over all weight matrices with dim>1, excluding wte/wpe."""
        if self.l1_scale <= 0:
            return jnp.float32(0.0)
        weights = []
        for blk in self.params["blocks"]:
            weights += [blk["c_attn_w"], blk["c_proj_w"], blk["fc_w"], blk["mproj_w"]]
        return self.l1_scale * self._cost_fn(tuple(weights))

    def estimate_mfu(self, *args, **kwargs):
        # TODO(synk): estimate_mfu passthrough not implemented (no wrapped torch model).
        raise NotImplementedError


# ----------------------------------------------------------------------------
if __name__ == "__main__":
    # small GPT config
    VOCAB, BLOCK, N_LAYER, N_HEAD, N_EMBD = 64, 8, 2, 2, 32
    B, T = 2, 8

    key = jax.random.PRNGKey(0)
    kp, ki, kt = jax.random.split(key, 3)

    params = init_gpt_params(kp, vocab_size=VOCAB, block_size=BLOCK,
                             n_layer=N_LAYER, n_head=N_HEAD, n_embd=N_EMBD)
    model = L1RegularizedGPT(params, n_head=N_HEAD, l1_scale=0.01)

    idx = jax.random.randint(ki, (B, T), 0, VOCAB, dtype=jnp.int32)
    targets = jax.random.randint(kt, (B, T), 0, VOCAB, dtype=jnp.int32)

    # training-style call (logits + loss) and inference-style call (logits only)
    logits, loss = model(idx, targets)
    logits_inf, _ = model(idx, None)
    cost = model.get_cost()

    jax.block_until_ready((logits, loss, logits_inf, cost))
    assert logits.shape == (B, T, VOCAB)
    assert logits_inf.shape == (B, T, VOCAB)
    assert loss.shape == ()
    assert cost.shape == ()
    print("KERNEL_OK")
</pallas_src>

<mosaic_0001>
module attributes {stable_mosaic.version = 11 : i64} {
  func.func @_attn_kernel(%arg0: i32, %arg1: memref<1x8x96xbf16, #tpu.memory_space<vmem>>, %arg2: memref<2x8x16xbf16, #tpu.memory_space<vmem>>) attributes {dimension_semantics = [#tpu.dimension_semantics<parallel>], iteration_bounds = array<i64: 2>, scalar_prefetch = 0 : i64, scratch_operands = 0 : i64, tpu.core_type = #tpu.core_type<tc>, window_params = [{transform_indices = @transform_0, window_bounds = array<i64: 1, 8, 96>}, {transform_indices = @transform_1, window_bounds = array<i64: 2, 8, 16>}]} {
    %c0 = arith.constant 0 : index
    %c0_0 = arith.constant 0 : index
    %c0_1 = arith.constant 0 : index
    %0 = vector.load %arg1[%c0, %c0_0, %c0_1] : memref<1x8x96xbf16, #tpu.memory_space<vmem>>, vector<1x8x96xbf16>
    %1 = vector.shape_cast %0 : vector<1x8x96xbf16> to vector<8x96xbf16>
    %2 = tpu.iota {dimensions = array<i32: 0>} : vector<8x1xi32>
    %3 = tpu.iota {dimensions = array<i32: 1>} : vector<1x8xi32>
    %4 = vector.broadcast %3 : vector<1x8xi32> to vector<8x8xi32>
    %5 = vector.broadcast %2 : vector<8x1xi32> to vector<8x8xi32>
    %6 = arith.cmpi sle, %4, %5 : vector<8x8xi32>
    %7 = vector.extract_strided_slice %1 {offsets = [0, 0], sizes = [8, 16], strides = [1, 1]} : vector<8x96xbf16> to vector<8x16xbf16>
    %8 = vector.extract_strided_slice %1 {offsets = [0, 32], sizes = [8, 16], strides = [1, 1]} : vector<8x96xbf16> to vector<8x16xbf16>
    %9 = vector.extract_strided_slice %1 {offsets = [0, 64], sizes = [8, 16], strides = [1, 1]} : vector<8x96xbf16> to vector<8x16xbf16>
    %cst = arith.constant dense<0.000000e+00> : vector<8x8xf32>
    %10 = tpu.matmul %7, %8, %cst {dimension_numbers = #tpu.dot_dimension_numbers<[1], [1], [0], [0], [0, 0, 1, 0], [], []>} : vector<8x16xbf16>, vector<8x16xbf16>, vector<8x8xf32> -> vector<8x8xf32>
    %cst_2 = arith.constant 2.500000e-01 : f32
    %11 = vector.broadcast %cst_2 : f32 to vector<8x8xf32>
    %12 = arith.mulf %10, %11 : vector<8x8xf32>
    %cst_3 = arith.constant -1.000000e+30 : f32
    %13 = vector.broadcast %cst_3 : f32 to vector<8x8xf32>
    %14 = arith.select %6, %12, %13 : vector<8x8xi1>, vector<8x8xf32>
    %cst_4 = arith.constant dense<0xFF800000> : vector<8xf32>
    %15 = vector.multi_reduction <maximumf>, %14, %cst_4 [1] : vector<8x8xf32> to vector<8xf32>
    %16 = vector.shape_cast %15 : vector<8xf32> to vector<8x1xf32>
    %17 = vector.broadcast %16 : vector<8x1xf32> to vector<8x8xf32>
    %18 = arith.subf %14, %17 : vector<8x8xf32>
    %19 = math.exp %18 : vector<8x8xf32>
    %cst_5 = arith.constant dense<0.000000e+00> : vector<8xf32>
    %20 = vector.multi_reduction <add>, %19, %cst_5 [1] : vector<8x8xf32> to vector<8xf32>
    %21 = vector.shape_cast %20 : vector<8xf32> to vector<8x1xf32>
    %22 = vector.broadcast %21 : vector<8x1xf32> to vector<8x8xf32>
    %23 = arith.divf %19, %22 : vector<8x8xf32>
    %24 = arith.truncf %23 : vector<8x8xf32> to vector<8x8xbf16>
    %cst_6 = arith.constant dense<0.000000e+00> : vector<8x16xf32>
    %25 = tpu.matmul %24, %9, %cst_6 {dimension_numbers = #tpu.dot_dimension_numbers<[1], [0], [0], [1], [0, 0, 1, 1], [], []>} : vector<8x8xbf16>, vector<8x16xbf16>, vector<8x16xf32> -> vector<8x16xf32>
    %26 = arith.truncf %25 : vector<8x16xf32> to vector<8x16xbf16>
    %c0_7 = arith.constant 0 : index
    %c0_8 = arith.constant 0 : index
    %c0_9 = arith.constant 0 : index
    %27 = vector.load %arg2[%c0_7, %c0_8, %c0_9] : memref<2x8x16xbf16, #tpu.memory_space<vmem>>, vector<1x8x16xbf16>
    %28 = vector.shape_cast %27 : vector<1x8x16xbf16> to vector<8x16xbf16>
    %29 = vector.shape_cast %26 : vector<8x16xbf16> to vector<1x8x16xbf16>
    tpu.vector_store %arg2[%c0_7, %c0_8, %c0_9], %29 {strides = array<i32>} : memref<2x8x16xbf16, #tpu.memory_space<vmem>>, vector<1x8x16xbf16>,
    %30 = vector.extract_strided_slice %1 {offsets = [0, 16], sizes = [8, 16], strides = [1, 1]} : vector<8x96xbf16> to vector<8x16xbf16>
    %31 = vector.extract_strided_slice %1 {offsets = [0, 48], sizes = [8, 16], strides = [1, 1]} : vector<8x96xbf16> to vector<8x16xbf16>
    %32 = vector.extract_strided_slice %1 {offsets = [0, 80], sizes = [8, 16], strides = [1, 1]} : vector<8x96xbf16> to vector<8x16xbf16>
    %cst_10 = arith.constant dense<0.000000e+00> : vector<8x8xf32>
    %33 = tpu.matmul %30, %31, %cst_10 {dimension_numbers = #tpu.dot_dimension_numbers<[1], [1], [0], [0], [0, 0, 1, 0], [], []>} : vector<8x16xbf16>, vector<8x16xbf16>, vector<8x8xf32> -> vector<8x8xf32>
    %cst_11 = arith.constant 2.500000e-01 : f32
    %34 = vector.broadcast %cst_11 : f32 to vector<8x8xf32>
    %35 = arith.mulf %33, %34 : vector<8x8xf32>
    %cst_12 = arith.constant -1.000000e+30 : f32
    %36 = vector.broadcast %cst_12 : f32 to vector<8x8xf32>
    %37 = arith.select %6, %35, %36 : vector<8x8xi1>, vector<8x8xf32>
    %cst_13 = arith.constant dense<0xFF800000> : vector<8xf32>
    %38 = vector.multi_reduction <maximumf>, %37, %cst_13 [1] : vector<8x8xf32> to vector<8xf32>
    %39 = vector.shape_cast %38 : vector<8xf32> to vector<8x1xf32>
    %40 = vector.broadcast %39 : vector<8x1xf32> to vector<8x8xf32>
    %41 = arith.subf %37, %40 : vector<8x8xf32>
    %42 = math.exp %41 : vector<8x8xf32>
    %cst_14 = arith.constant dense<0.000000e+00> : vector<8xf32>
    %43 = vector.multi_reduction <add>, %42, %cst_14 [1] : vector<8x8xf32> to vector<8xf32>
    %44 = vector.shape_cast %43 : vector<8xf32> to vector<8x1xf32>
    %45 = vector.broadcast %44 : vector<8x1xf32> to vector<8x8xf32>
    %46 = arith.divf %42, %45 : vector<8x8xf32>
    %47 = arith.truncf %46 : vector<8x8xf32> to vector<8x8xbf16>
    %cst_15 = arith.constant dense<0.000000e+00> : vector<8x16xf32>
    %48 = tpu.matmul %47, %32, %cst_15 {dimension_numbers = #tpu.dot_dimension_numbers<[1], [0], [0], [1], [0, 0, 1, 1], [], []>} : vector<8x8xbf16>, vector<8x16xbf16>, vector<8x16xf32> -> vector<8x16xf32>
    %49 = arith.truncf %48 : vector<8x16xf32> to vector<8x16xbf16>
    %c1 = arith.constant 1 : index
    %c0_16 = arith.constant 0 : index
    %c0_17 = arith.constant 0 : index
    %50 = vector.load %arg2[%c1, %c0_16, %c0_17] : memref<2x8x16xbf16, #tpu.memory_space<vmem>>, vector<1x8x16xbf16>
    %51 = vector.shape_cast %50 : vector<1x8x16xbf16> to vector<8x16xbf16>
    %52 = vector.shape_cast %49 : vector<8x16xbf16> to vector<1x8x16xbf16>
    tpu.vector_store %arg2[%c1, %c0_16, %c0_17], %52 {strides = array<i32>} : memref<2x8x16xbf16, #tpu.memory_space<vmem>>, vector<1x8x16xbf16>,
    return
  }
  func.func @transform_0(%arg0: i32) -> (i32, i32, i32) {
    %c0_i32 = arith.constant 0 : i32
    %c0_i32_0 = arith.constant 0 : i32
    %c0_i32_1 = arith.constant 0 : i32
    return %arg0, %c0_i32, %c0_i32_0 : i32, i32, i32
  }
  func.func @transform_1(%arg0: i32) -> (i32, i32, i32) {
    %c0_i32 = arith.constant 0 : i32
    %c0_i32_0 = arith.constant 0 : i32
    %c0_i32_1 = arith.constant 0 : i32
    return %c0_i32, %arg0, %c0_i32_0 : i32, i32, i32
  }
}

module attributes {stable_mosaic.version = 11 : i64} {
  func.func @_ln_linear_kernel(%arg0: i32, %arg1: i32, %arg2: memref<16x32xf32, #tpu.memory_space<vmem>>, %arg3: memref<1x32xf32, #tpu.memory_space<vmem>>, %arg4: memref<1x32xf32, #tpu.memory_space<vmem>>, %arg5: memref<32x96xbf16, #tpu.memory_space<vmem>>, %arg6: memref<1x96xf32, #tpu.memory_space<vmem>>, %arg7: memref<16x96xbf16, #tpu.memory_space<vmem>>, %arg8: memref<16x32xbf16, #tpu.memory_space<vmem>>) attributes {dimension_semantics = [#tpu.dimension_semantics<parallel>, #tpu.dimension_semantics<arbitrary>], iteration_bounds = array<i64: 1, 1>, scalar_prefetch = 0 : i64, scratch_operands = 1 : i64, tpu.core_type = #tpu.core_type<tc>, window_params = [{transform_indices = @transform_0, window_bounds = array<i64: 16, 32>}, {pipeline_mode = #tpu.pipeline_mode<synchronous>, transform_indices = @transform_1, window_bounds = array<i64: 1, 32>}, {pipeline_mode = #tpu.pipeline_mode<synchronous>, transform_indices = @transform_2, window_bounds = array<i64: 1, 32>}, {transform_indices = @transform_3, window_bounds = array<i64: 32, 96>}, {transform_indices = @transform_4, window_bounds = array<i64: 1, 96>}, {transform_indices = @transform_5, window_bounds = array<i64: 16, 96>}]} {
    %c0_i32 = arith.constant 0 : i32
    %0 = arith.cmpi eq, %arg1, %c0_i32 : i32
    %1 = arith.extui %0 : i1 to i32
    %c0_i32_0 = arith.constant 0 : i32
    %2 = arith.cmpi ne, %1, %c0_i32_0 : i32
    scf.if %2 {
      %c0_8 = arith.constant 0 : index
      %c0_9 = arith.constant 0 : index
      %11 = vector.load %arg2[%c0_8, %c0_9] : memref<16x32xf32, #tpu.memory_space<vmem>>, vector<16x32xf32>
      %cst_10 = arith.constant dense<0.000000e+00> : vector<16xf32>
      %12 = vector.multi_reduction <add>, %11, %cst_10 [1] : vector<16x32xf32> to vector<16xf32>
      %13 = vector.shape_cast %12 : vector<16xf32> to vector<16x1xf32>
      %cst_11 = arith.constant 3.200000e+01 : f32
      %14 = vector.broadcast %cst_11 : f32 to vector<16x1xf32>
      %15 = arith.divf %13, %14 : vector<16x1xf32>
      %16 = vector.broadcast %15 : vector<16x1xf32> to vector<16x32xf32>
      %17 = arith.subf %11, %16 : vector<16x32xf32>
      %18 = arith.mulf %17, %17 : vector<16x32xf32>
      %cst_12 = arith.constant dense<0.000000e+00> : vector<16xf32>
      %19 = vector.multi_reduction <add>, %18, %cst_12 [1] : vector<16x32xf32> to vector<16xf32>
      %20 = vector.shape_cast %19 : vector<16xf32> to vector<16x1xf32>
      %cst_13 = arith.constant 3.200000e+01 : f32
      %21 = vector.broadcast %cst_13 : f32 to vector<16x1xf32>
      %22 = arith.divf %20, %21 : vector<16x1xf32>
      %cst_14 = arith.constant 9.99999974E-6 : f32
      %23 = vector.broadcast %cst_14 : f32 to vector<16x1xf32>
      %24 = arith.addf %22, %23 : vector<16x1xf32>
      %25 = math.rsqrt %24 : vector<16x1xf32>
      %26 = vector.broadcast %25 : vector<16x1xf32> to vector<16x32xf32>
      %27 = arith.mulf %17, %26 : vector<16x32xf32>
      %c0_15 = arith.constant 0 : index
      %c0_16 = arith.constant 0 : index
      %28 = vector.load %arg3[%c0_15, %c0_16] : memref<1x32xf32, #tpu.memory_space<vmem>>, vector<1x32xf32>
      %29 = vector.broadcast %28 : vector<1x32xf32> to vector<16x32xf32>
      %30 = arith.mulf %27, %29 : vector<16x32xf32>
      %c0_17 = arith.constant 0 : index
      %c0_18 = arith.constant 0 : index
      %31 = vector.load %arg4[%c0_17, %c0_18] : memref<1x32xf32, #tpu.memory_space<vmem>>, vector<1x32xf32>
      %32 = vector.broadcast %31 : vector<1x32xf32> to vector<16x32xf32>
      %33 = arith.addf %30, %32 : vector<16x32xf32>
      %34 = arith.truncf %33 : vector<16x32xf32> to vector<16x32xbf16>
      %c0_19 = arith.constant 0 : index
      %c0_20 = arith.constant 0 : index
      %35 = vector.load %arg8[%c0_19, %c0_20] : memref<16x32xbf16, #tpu.memory_space<vmem>>, vector<16x32xbf16>
      tpu.vector_store %arg8[%c0_19, %c0_20], %34 {strides = array<i32>} : memref<16x32xbf16, #tpu.memory_space<vmem>>, vector<16x32xbf16>,
    } else {
    }
    %c0 = arith.constant 0 : index
    %c0_1 = arith.constant 0 : index
    %3 = vector.load %arg8[%c0, %c0_1] : memref<16x32xbf16, #tpu.memory_space<vmem>>, vector<16x32xbf16>
    %c0_2 = arith.constant 0 : index
    %c0_3 = arith.constant 0 : index
    %4 = vector.load %arg5[%c0_2, %c0_3] : memref<32x96xbf16, #tpu.memory_space<vmem>>, vector<32x96xbf16>
    %cst = arith.constant dense<0.000000e+00> : vector<16x96xf32>
    %5 = tpu.matmul %3, %4, %cst {dimension_numbers = #tpu.dot_dimension_numbers<[1], [0], [0], [1], [0, 0, 1, 1], [], []>} : vector<16x32xbf16>, vector<32x96xbf16>, vector<16x96xf32> -> vector<16x96xf32>
    %c0_4 = arith.constant 0 : index
    %c0_5 = arith.constant 0 : index
    %6 = vector.load %arg6[%c0_4, %c0_5] : memref<1x96xf32, #tpu.memory_space<vmem>>, vector<1x96xf32>
    %7 = vector.broadcast %6 : vector<1x96xf32> to vector<16x96xf32>
    %8 = arith.addf %5, %7 : vector<16x96xf32>
    %9 = arith.truncf %8 : vector<16x96xf32> to vector<16x96xbf16>
    %c0_6 = arith.constant 0 : index
    %c0_7 = arith.constant 0 : index
    %10 = vector.load %arg7[%c0_6, %c0_7] : memref<16x96xbf16, #tpu.memory_space<vmem>>, vector<16x96xbf16>
    tpu.vector_store %arg7[%c0_6, %c0_7], %9 {strides = array<i32>} : memref<16x96xbf16, #tpu.memory_space<vmem>>, vector<16x96xbf16>,
    return
  }
  func.func @transform_0(%arg0: i32, %arg1: i32) -> (i32, i32) {
    %c0_i32 = arith.constant 0 : i32
    %c0_i32_0 = arith.constant 0 : i32
    return %arg0, %c0_i32 : i32, i32
  }
  func.func @transform_1(%arg0: i32, %arg1: i32) -> (i32, i32) {
    %c0_i32 = arith.constant 0 : i32
    %c0_i32_0 = arith.constant 0 : i32
    %c0_i32_1 = arith.constant 0 : i32
    return %c0_i32, %c0_i32_0 : i32, i32
  }
  func.func @transform_2(%arg0: i32, %arg1: i32) -> (i32, i32) {
    %c0_i32 = arith.constant 0 : i32
    %c0_i32_0 = arith.constant 0 : i32
    %c0_i32_1 = arith.constant 0 : i32
    return %c0_i32, %c0_i32_0 : i32, i32
  }
  func.func @transform_3(%arg0: i32, %arg1: i32) -> (i32, i32) {
    %c0_i32 = arith.constant 0 : i32
    %c0_i32_0 = arith.constant 0 : i32
    return %c0_i32, %arg1 : i32, i32
  }
  func.func @transform_4(%arg0: i32, %arg1: i32) -> (i32, i32) {
    %c0_i32 = arith.constant 0 : i32
    %c0_i32_0 = arith.constant 0 : i32
    return %c0_i32, %arg1 : i32, i32
  }
  func.func @transform_5(%arg0: i32, %arg1: i32) -> (i32, i32) {
    %c0_i32 = arith.constant 0 : i32
    return %arg0, %arg1 : i32, i32
  }
}

module attributes {stable_mosaic.version = 11 : i64} {
  func.func @_headproj_kernel(%arg0: i32, %arg1: i32, %arg2: memref<1x16x16xbf16, #tpu.memory_space<vmem>>, %arg3: memref<1x16x32xbf16, #tpu.memory_space<vmem>>, %arg4: memref<1x32xf32, #tpu.memory_space<vmem>>, %arg5: memref<16x32xf32, #tpu.memory_space<vmem>>, %arg6: memref<16x32xf32, #tpu.memory_space<vmem>>, %arg7: memref<16x32xf32, #tpu.memory_space<vmem>>) attributes {dimension_semantics = [#tpu.dimension_semantics<parallel>, #tpu.dimension_semantics<arbitrary>], iteration_bounds = array<i64: 1, 2>, scalar_prefetch = 0 : i64, scratch_operands = 1 : i64, tpu.core_type = #tpu.core_type<tc>, window_params = [{transform_indices = @transform_0, window_bounds = array<i64: 1, 16, 16>}, {transform_indices = @transform_1, window_bounds = array<i64: 1, 16, 32>}, {pipeline_mode = #tpu.pipeline_mode<synchronous>, transform_indices = @transform_2, window_bounds = array<i64: 1, 32>}, {transform_indices = @transform_3, window_bounds = array<i64: 16, 32>}, {transform_indices = @transform_4, window_bounds = array<i64: 16, 32>}]} {
    %c0_i32 = arith.constant 0 : i32
    %0 = arith.cmpi eq, %arg1, %c0_i32 : i32
    %1 = arith.extui %0 : i1 to i32
    %c0_i32_0 = arith.constant 0 : i32
    %2 = arith.cmpi ne, %1, %c0_i32_0 : i32
    scf.if %2 {
      %cst_11 = arith.constant 0.000000e+00 : f32
      %14 = vector.broadcast %cst_11 : f32 to vector<16x32xf32>
      %c0_12 = arith.constant 0 : index
      %c0_13 = arith.constant 0 : index
      %15 = vector.load %arg7[%c0_12, %c0_13] : memref<16x32xf32, #tpu.memory_space<vmem>>, vector<16x32xf32>
      tpu.vector_store %arg7[%c0_12, %c0_13], %14 {strides = array<i32>} : memref<16x32xf32, #tpu.memory_space<vmem>>, vector<16x32xf32>,
    } else {
    }
    %c0 = arith.constant 0 : index
    %c0_1 = arith.constant 0 : index
    %3 = vector.load %arg7[%c0, %c0_1] : memref<16x32xf32, #tpu.memory_space<vmem>>, vector<16x32xf32>
    %c0_2 = arith.constant 0 : index
    %c0_3 = arith.constant 0 : index
    %c0_4 = arith.constant 0 : index
    %4 = vector.load %arg2[%c0_2, %c0_3, %c0_4] : memref<1x16x16xbf16, #tpu.memory_space<vmem>>, vector<1x16x16xbf16>
    %5 = vector.shape_cast %4 : vector<1x16x16xbf16> to vector<16x16xbf16>
    %c0_5 = arith.constant 0 : index
    %c0_6 = arith.constant 0 : index
    %c0_7 = arith.constant 0 : index
    %6 = vector.load %arg3[%c0_5, %c0_6, %c0_7] : memref<1x16x32xbf16, #tpu.memory_space<vmem>>, vector<1x16x32xbf16>
    %7 = vector.shape_cast %6 : vector<1x16x32xbf16> to vector<16x32xbf16>
    %cst = arith.constant dense<0.000000e+00> : vector<16x32xf32>
    %8 = tpu.matmul %5, %7, %cst {dimension_numbers = #tpu.dot_dimension_numbers<[1], [0], [0], [1], [0, 0, 1, 1], [], []>} : vector<16x16xbf16>, vector<16x32xbf16>, vector<16x32xf32> -> vector<16x32xf32>
    %9 = arith.addf %3, %8 : vector<16x32xf32>
    %c0_8 = arith.constant 0 : index
    %c0_9 = arith.constant 0 : index
    %10 = vector.load %arg7[%c0_8, %c0_9] : memref<16x32xf32, #tpu.memory_space<vmem>>, vector<16x32xf32>
    tpu.vector_store %arg7[%c0_8, %c0_9], %9 {strides = array<i32>} : memref<16x32xf32, #tpu.memory_space<vmem>>, vector<16x32xf32>,
    %c1_i32 = arith.constant 1 : i32
    %11 = arith.cmpi eq, %arg1, %c1_i32 : i32
    %12 = arith.extui %11 : i1 to i32
    %c0_i32_10 = arith.constant 0 : i32
    %13 = arith.cmpi ne, %12, %c0_i32_10 : i32
    scf.if %13 {
      %c0_11 = arith.constant 0 : index
      %c0_12 = arith.constant 0 : index
      %14 = vector.load %arg7[%c0_11, %c0_12] : memref<16x32xf32, #tpu.memory_space<vmem>>, vector<16x32xf32>
      %c0_13 = arith.constant 0 : index
      %c0_14 = arith.constant 0 : index
      %15 = vector.load %arg4[%c0_13, %c0_14] : memref<1x32xf32, #tpu.memory_space<vmem>>, vector<1x32xf32>
      %16 = vector.broadcast %15 : vector<1x32xf32> to vector<16x32xf32>
      %17 = arith.addf %14, %16 : vector<16x32xf32>
      %c0_15 = arith.constant 0 : index
      %c0_16 = arith.constant 0 : index
      %18 = vector.load %arg5[%c0_15, %c0_16] : memref<16x32xf32, #tpu.memory_space<vmem>>, vector<16x32xf32>
      %19 = arith.addf %17, %18 : vector<16x32xf32>
      %c0_17 = arith.constant 0 : index
      %c0_18 = arith.constant 0 : index
      %20 = vector.load %arg6[%c0_17, %c0_18] : memref<16x32xf32, #tpu.memory_space<vmem>>, vector<16x32xf32>
      tpu.vector_store %arg6[%c0_17, %c0_18], %19 {strides = array<i32>} : memref<16x32xf32, #tpu.memory_space<vmem>>, vector<16x32xf32>,
    } else {
    }
    return
  }
  func.func @transform_0(%arg0: i32, %arg1: i32) -> (i32, i32, i32) {
    %c0_i32 = arith.constant 0 : i32
    %c0_i32_0 = arith.constant 0 : i32
    return %arg1, %arg0, %c0_i32 : i32, i32, i32
  }
  func.func @transform_1(%arg0: i32, %arg1: i32) -> (i32, i32, i32) {
    %c0_i32 = arith.constant 0 : i32
    %c0_i32_0 = arith.constant 0 : i32
    %c0_i32_1 = arith.constant 0 : i32
    return %arg1, %c0_i32, %c0_i32_0 : i32, i32, i32
  }
  func.func @transform_2(%arg0: i32, %arg1: i32) -> (i32, i32) {
    %c0_i32 = arith.constant 0 : i32
    %c0_i32_0 = arith.constant 0 : i32
    %c0_i32_1 = arith.constant 0 : i32
    return %c0_i32, %c0_i32_0 : i32, i32
  }
  func.func @transform_3(%arg0: i32, %arg1: i32) -> (i32, i32) {
    %c0_i32 = arith.constant 0 : i32
    %c0_i32_0 = arith.constant 0 : i32
    return %arg0, %c0_i32 : i32, i32
  }
  func.func @transform_4(%arg0: i32, %arg1: i32) -> (i32, i32) {
    %c0_i32 = arith.constant 0 : i32
    %c0_i32_0 = arith.constant 0 : i32
    return %arg0, %c0_i32 : i32, i32
  }
}

module attributes {stable_mosaic.version = 11 : i64} {
  func.func @_ln_linear_kernel(%arg0: i32, %arg1: i32, %arg2: memref<16x32xf32, #tpu.memory_space<vmem>>, %arg3: memref<1x32xf32, #tpu.memory_space<vmem>>, %arg4: memref<1x32xf32, #tpu.memory_space<vmem>>, %arg5: memref<32x128xbf16, #tpu.memory_space<vmem>>, %arg6: memref<1x128xf32, #tpu.memory_space<vmem>>, %arg7: memref<16x128xbf16, #tpu.memory_space<vmem>>, %arg8: memref<16x32xbf16, #tpu.memory_space<vmem>>) attributes {dimension_semantics = [#tpu.dimension_semantics<parallel>, #tpu.dimension_semantics<arbitrary>], iteration_bounds = array<i64: 1, 1>, scalar_prefetch = 0 : i64, scratch_operands = 1 : i64, tpu.core_type = #tpu.core_type<tc>, window_params = [{transform_indices = @transform_0, window_bounds = array<i64: 16, 32>}, {pipeline_mode = #tpu.pipeline_mode<synchronous>, transform_indices = @transform_1, window_bounds = array<i64: 1, 32>}, {pipeline_mode = #tpu.pipeline_mode<synchronous>, transform_indices = @transform_2, window_bounds = array<i64: 1, 32>}, {transform_indices = @transform_3, window_bounds = array<i64: 32, 128>}, {transform_indices = @transform_4, window_bounds = array<i64: 1, 128>}, {transform_indices = @transform_5, window_bounds = array<i64: 16, 128>}]} {
    %c0_i32 = arith.constant 0 : i32
    %0 = arith.cmpi eq, %arg1, %c0_i32 : i32
    %1 = arith.extui %0 : i1 to i32
    %c0_i32_0 = arith.constant 0 : i32
    %2 = arith.cmpi ne, %1, %c0_i32_0 : i32
    scf.if %2 {
      %c0_12 = arith.constant 0 : index
      %c0_13 = arith.constant 0 : index
      %24 = vector.load %arg2[%c0_12, %c0_13] : memref<16x32xf32, #tpu.memory_space<vmem>>, vector<16x32xf32>
      %cst_14 = arith.constant dense<0.000000e+00> : vector<16xf32>
      %25 = vector.multi_reduction <add>, %24, %cst_14 [1] : vector<16x32xf32> to vector<16xf32>
      %26 = vector.shape_cast %25 : vector<16xf32> to vector<16x1xf32>
      %cst_15 = arith.constant 3.200000e+01 : f32
      %27 = vector.broadcast %cst_15 : f32 to vector<16x1xf32>
      %28 = arith.divf %26, %27 : vector<16x1xf32>
      %29 = vector.broadcast %28 : vector<16x1xf32> to vector<16x32xf32>
      %30 = arith.subf %24, %29 : vector<16x32xf32>
      %31 = arith.mulf %30, %30 : vector<16x32xf32>
      %cst_16 = arith.constant dense<0.000000e+00> : vector<16xf32>
      %32 = vector.multi_reduction <add>, %31, %cst_16 [1] : vector<16x32xf32> to vector<16xf32>
      %33 = vector.shape_cast %32 : vector<16xf32> to vector<16x1xf32>
      %cst_17 = arith.constant 3.200000e+01 : f32
      %34 = vector.broadcast %cst_17 : f32 to vector<16x1xf32>
      %35 = arith.divf %33, %34 : vector<16x1xf32>
      %cst_18 = arith.constant 9.99999974E-6 : f32
      %36 = vector.broadcast %cst_18 : f32 to vector<16x1xf32>
      %37 = arith.addf %35, %36 : vector<16x1xf32>
      %38 = math.rsqrt %37 : vector<16x1xf32>
      %39 = vector.broadcast %38 : vector<16x1xf32> to vector<16x32xf32>
      %40 = arith.mulf %30, %39 : vector<16x32xf32>
      %c0_19 = arith.constant 0 : index
      %c0_20 = arith.constant 0 : index
      %41 = vector.load %arg3[%c0_19, %c0_20] : memref<1x32xf32, #tpu.memory_space<vmem>>, vector<1x32xf32>
      %42 = vector.broadcast %41 : vector<1x32xf32> to vector<16x32xf32>
      %43 = arith.mulf %40, %42 : vector<16x32xf32>
      %c0_21 = arith.constant 0 : index
      %c0_22 = arith.constant 0 : index
      %44 = vector.load %arg4[%c0_21, %c0_22] : memref<1x32xf32, #tpu.memory_space<vmem>>, vector<1x32xf32>
      %45 = vector.broadcast %44 : vector<1x32xf32> to vector<16x32xf32>
      %46 = arith.addf %43, %45 : vector<16x32xf32>
      %47 = arith.truncf %46 : vector<16x32xf32> to vector<16x32xbf16>
      %c0_23 = arith.constant 0 : index
      %c0_24 = arith.constant 0 : index
      %48 = vector.load %arg8[%c0_23, %c0_24] : memref<16x32xbf16, #tpu.memory_space<vmem>>, vector<16x32xbf16>
      tpu.vector_store %arg8[%c0_23, %c0_24], %47 {strides = array<i32>} : memref<16x32xbf16, #tpu.memory_space<vmem>>, vector<16x32xbf16>,
    } else {
    }
    %c0 = arith.constant 0 : index
    %c0_1 = arith.constant 0 : index
    %3 = vector.load %arg8[%c0, %c0_1] : memref<16x32xbf16, #tpu.memory_space<vmem>>, vector<16x32xbf16>
    %c0_2 = arith.constant 0 : index
    %c0_3 = arith.constant 0 : index
    %4 = vector.load %arg5[%c0_2, %c0_3] : memref<32x128xbf16, #tpu.memory_space<vmem>>, vector<32x128xbf16>
    %cst = arith.constant dense<0.000000e+00> : vector<16x128xf32>
    %5 = tpu.matmul %3, %4, %cst {dimension_numbers = #tpu.dot_dimension_numbers<[1], [0], [0], [1], [0, 0, 1, 1], [], []>} : vector<16x32xbf16>, vector<32x128xbf16>, vector<16x128xf32> -> vector<16x128xf32>
    %c0_4 = arith.constant 0 : index
    %c0_5 = arith.constant 0 : index
    %6 = vector.load %arg6[%c0_4, %c0_5] : memref<1x128xf32, #tpu.memory_space<vmem>>, vector<1x128xf32>
    %7 = vector.broadcast %6 : vector<1x128xf32> to vector<16x128xf32>
    %8 = arith.addf %5, %7 : vector<16x128xf32>
    %cst_6 = arith.constant 5.000000e-01 : f32
    %9 = vector.broadcast %cst_6 : f32 to vector<16x128xf32>
    %10 = arith.mulf %9, %8 : vector<16x128xf32>
    %cst_7 = arith.constant 4.471500e-02 : f32
    %11 = vector.broadcast %cst_7 : f32 to vector<16x128xf32>
    %12 = arith.mulf %11, %8 : vector<16x128xf32>
    %13 = arith.mulf %12, %8 : vector<16x128xf32>
    %14 = arith.mulf %13, %8 : vector<16x128xf32>
    %15 = arith.addf %8, %14 : vector<16x128xf32>
    %cst_8 = arith.constant 0.797884583 : f32
    %16 = vector.broadcast %cst_8 : f32 to vector<16x128xf32>
    %17 = arith.mulf %16, %15 : vector<16x128xf32>
    %18 = math.tanh %17 : vector<16x128xf32>
    %cst_9 = arith.constant 1.000000e+00 : f32
    %19 = vector.broadcast %cst_9 : f32 to vector<16x128xf32>
    %20 = arith.addf %19, %18 : vector<16x128xf32>
    %21 = arith.mulf %10, %20 : vector<16x128xf32>
    %22 = arith.truncf %21 : vector<16x128xf32> to vector<16x128xbf16>
    %c0_10 = arith.constant 0 : index
    %c0_11 = arith.constant 0 : index
    %23 = vector.load %arg7[%c0_10, %c0_11] : memref<16x128xbf16, #tpu.memory_space<vmem>>, vector<16x128xbf16>
    tpu.vector_store %arg7[%c0_10, %c0_11], %22 {strides = array<i32>} : memref<16x128xbf16, #tpu.memory_space<vmem>>, vector<16x128xbf16>,
    return
  }
  func.func @transform_0(%arg0: i32, %arg1: i32) -> (i32, i32) {
    %c0_i32 = arith.constant 0 : i32
    %c0_i32_0 = arith.constant 0 : i32
    return %arg0, %c0_i32 : i32, i32
  }
  func.func @transform_1(%arg0: i32, %arg1: i32) -> (i32, i32) {
    %c0_i32 = arith.constant 0 : i32
    %c0_i32_0 = arith.constant 0 : i32
    %c0_i32_1 = arith.constant 0 : i32
    return %c0_i32, %c0_i32_0 : i32, i32
  }
  func.func @transform_2(%arg0: i32, %arg1: i32) -> (i32, i32) {
    %c0_i32 = arith.constant 0 : i32
    %c0_i32_0 = arith.constant 0 : i32
    %c0_i32_1 = arith.constant 0 : i32
    return %c0_i32, %c0_i32_0 : i32, i32
  }
  func.func @transform_3(%arg0: i32, %arg1: i32) -> (i32, i32) {
    %c0_i32 = arith.constant 0 : i32
    %c0_i32_0 = arith.constant 0 : i32
    return %c0_i32, %arg1 : i32, i32
  }
  func.func @transform_4(%arg0: i32, %arg1: i32) -> (i32, i32) {
    %c0_i32 = arith.constant 0 : i32
    %c0_i32_0 = arith.constant 0 : i32
    return %c0_i32, %arg1 : i32, i32
  }
  func.func @transform_5(%arg0: i32, %arg1: i32) -> (i32, i32) {
    %c0_i32 = arith.constant 0 : i32
    return %arg0, %arg1 : i32, i32
  }
}

module attributes {stable_mosaic.version = 11 : i64} {
  func.func @_linear_kernel(%arg0: i32, %arg1: i32, %arg2: i32, %arg3: memref<16x128xbf16, #tpu.memory_space<vmem>>, %arg4: memref<128x32xbf16, #tpu.memory_space<vmem>>, %arg5: memref<1x32xf32, #tpu.memory_space<vmem>>, %arg6: memref<16x32xf32, #tpu.memory_space<vmem>>, %arg7: memref<16x32xf32, #tpu.memory_space<vmem>>, %arg8: memref<16x32xf32, #tpu.memory_space<vmem>>) attributes {dimension_semantics = [#tpu.dimension_semantics<parallel>, #tpu.dimension_semantics<parallel>, #tpu.dimension_semantics<arbitrary>], iteration_bounds = array<i64: 1, 1, 1>, scalar_prefetch = 0 : i64, scratch_operands = 1 : i64, tpu.core_type = #tpu.core_type<tc>, window_params = [{transform_indices = @transform_0, window_bounds = array<i64: 16, 128>}, {transform_indices = @transform_1, window_bounds = array<i64: 128, 32>}, {transform_indices = @transform_2, window_bounds = array<i64: 1, 32>}, {transform_indices = @transform_3, window_bounds = array<i64: 16, 32>}, {transform_indices = @transform_4, window_bounds = array<i64: 16, 32>}]} {
    %c0_i32 = arith.constant 0 : i32
    %0 = arith.cmpi eq, %arg2, %c0_i32 : i32
    %1 = arith.extui %0 : i1 to i32
    %c0_i32_0 = arith.constant 0 : i32
    %2 = arith.cmpi ne, %1, %c0_i32_0 : i32
    scf.if %2 {
      %cst_10 = arith.constant 0.000000e+00 : f32
      %12 = vector.broadcast %cst_10 : f32 to vector<16x32xf32>
      %c0_11 = arith.constant 0 : index
      %c0_12 = arith.constant 0 : index
      %13 = vector.load %arg8[%c0_11, %c0_12] : memref<16x32xf32, #tpu.memory_space<vmem>>, vector<16x32xf32>
      tpu.vector_store %arg8[%c0_11, %c0_12], %12 {strides = array<i32>} : memref<16x32xf32, #tpu.memory_space<vmem>>, vector<16x32xf32>,
    } else {
    }
    %c0 = arith.constant 0 : index
    %c0_1 = arith.constant 0 : index
    %3 = vector.load %arg8[%c0, %c0_1] : memref<16x32xf32, #tpu.memory_space<vmem>>, vector<16x32xf32>
    %c0_2 = arith.constant 0 : index
    %c0_3 = arith.constant 0 : index
    %4 = vector.load %arg3[%c0_2, %c0_3] : memref<16x128xbf16, #tpu.memory_space<vmem>>, vector<16x128xbf16>
    %c0_4 = arith.constant 0 : index
    %c0_5 = arith.constant 0 : index
    %5 = vector.load %arg4[%c0_4, %c0_5] : memref<128x32xbf16, #tpu.memory_space<vmem>>, vector<128x32xbf16>
    %cst = arith.constant dense<0.000000e+00> : vector<16x32xf32>
    %6 = tpu.matmul %4, %5, %cst {dimension_numbers = #tpu.dot_dimension_numbers<[1], [0], [0], [1], [0, 0, 1, 1], [], []>} : vector<16x128xbf16>, vector<128x32xbf16>, vector<16x32xf32> -> vector<16x32xf32>
    %7 = arith.addf %3, %6 : vector<16x32xf32>
    %c0_6 = arith.constant 0 : index
    %c0_7 = arith.constant 0 : index
    %8 = vector.load %arg8[%c0_6, %c0_7] : memref<16x32xf32, #tpu.memory_space<vmem>>, vector<16x32xf32>
    tpu.vector_store %arg8[%c0_6, %c0_7], %7 {strides = array<i32>} : memref<16x32xf32, #tpu.memory_space<vmem>>, vector<16x32xf32>,
    %c0_i32_8 = arith.constant 0 : i32
    %9 = arith.cmpi eq, %arg2, %c0_i32_8 : i32
    %10 = arith.extui %9 : i1 to i32
    %c0_i32_9 = arith.constant 0 : i32
    %11 = arith.cmpi ne, %10, %c0_i32_9 : i32
    scf.if %11 {
      %c0_10 = arith.constant 0 : index
      %c0_11 = arith.constant 0 : index
      %12 = vector.load %arg8[%c0_10, %c0_11] : memref<16x32xf32, #tpu.memory_space<vmem>>, vector<16x32xf32>
      %c0_12 = arith.constant 0 : index
      %c0_13 = arith.constant 0 : index
      %13 = vector.load %arg5[%c0_12, %c0_13] : memref<1x32xf32, #tpu.memory_space<vmem>>, vector<1x32xf32>
      %14 = vector.broadcast %13 : vector<1x32xf32> to vector<16x32xf32>
      %15 = arith.addf %12, %14 : vector<16x32xf32>
      %c0_14 = arith.constant 0 : index
      %c0_15 = arith.constant 0 : index
      %16 = vector.load %arg6[%c0_14, %c0_15] : memref<16x32xf32, #tpu.memory_space<vmem>>, vector<16x32xf32>
      %17 = arith.addf %15, %16 : vector<16x32xf32>
      %c0_16 = arith.constant 0 : index
      %c0_17 = arith.constant 0 : index
      %18 = vector.load %arg7[%c0_16, %c0_17] : memref<16x32xf32, #tpu.memory_space<vmem>>, vector<16x32xf32>
      tpu.vector_store %arg7[%c0_16, %c0_17], %17 {strides = array<i32>} : memref<16x32xf32, #tpu.memory_space<vmem>>, vector<16x32xf32>,
    } else {
    }
    return
  }
  func.func @transform_0(%arg0: i32, %arg1: i32, %arg2: i32) -> (i32, i32) {
    %c0_i32 = arith.constant 0 : i32
    return %arg0, %arg2 : i32, i32
  }
  func.func @transform_1(%arg0: i32, %arg1: i32, %arg2: i32) -> (i32, i32) {
    %c0_i32 = arith.constant 0 : i32
    return %arg2, %arg1 : i32, i32
  }
  func.func @transform_2(%arg0: i32, %arg1: i32, %arg2: i32) -> (i32, i32) {
    %c0_i32 = arith.constant 0 : i32
    %c0_i32_0 = arith.constant 0 : i32
    return %c0_i32, %arg1 : i32, i32
  }
  func.func @transform_3(%arg0: i32, %arg1: i32, %arg2: i32) -> (i32, i32) {
    %c0_i32 = arith.constant 0 : i32
    return %arg0, %arg1 : i32, i32
  }
  func.func @transform_4(%arg0: i32, %arg1: i32, %arg2: i32) -> (i32, i32) {
    %c0_i32 = arith.constant 0 : i32
    return %arg0, %arg1 : i32, i32
  }
}

module attributes {stable_mosaic.version = 11 : i64} {
  func.func @_ln_lm_head_ce_kernel(%arg0: i32, %arg1: i32, %arg2: memref<16x32xf32, #tpu.memory_space<vmem>>, %arg3: memref<1x32xf32, #tpu.memory_space<vmem>>, %arg4: memref<1x32xf32, #tpu.memory_space<vmem>>, %arg5: memref<32x64xbf16, #tpu.memory_space<vmem>>, %arg6: memref<16x1xi32, #tpu.memory_space<vmem>>, %arg7: memref<16x64xf32, #tpu.memory_space<vmem>>, %arg8: memref<16x1xf32, #tpu.memory_space<vmem>>, %arg9: memref<16x1xf32, #tpu.memory_space<vmem>>, %arg10: memref<16x32xbf16, #tpu.memory_space<vmem>>, %arg11: memref<16x1xf32, #tpu.memory_space<vmem>>, %arg12: memref<16x1xf32, #tpu.memory_space<vmem>>, %arg13: memref<16x1xf32, #tpu.memory_space<vmem>>) attributes {dimension_semantics = [#tpu.dimension_semantics<parallel>, #tpu.dimension_semantics<arbitrary>], iteration_bounds = array<i64: 1, 1>, scalar_prefetch = 0 : i64, scratch_operands = 4 : i64, tpu.core_type = #tpu.core_type<tc>, window_params = [{transform_indices = @transform_0, window_bounds = array<i64: 16, 32>}, {pipeline_mode = #tpu.pipeline_mode<synchronous>, transform_indices = @transform_1, window_bounds = array<i64: 1, 32>}, {pipeline_mode = #tpu.pipeline_mode<synchronous>, transform_indices = @transform_2, window_bounds = array<i64: 1, 32>}, {transform_indices = @transform_3, window_bounds = array<i64: 32, 64>}, {transform_indices = @transform_4, window_bounds = array<i64: 16, 1>}, {transform_indices = @transform_5, window_bounds = array<i64: 16, 64>}, {transform_indices = @transform_6, window_bounds = array<i64: 16, 1>}, {transform_indices = @transform_7, window_bounds = array<i64: 16, 1>}]} {
    %c0_i32 = arith.constant 0 : i32
    %0 = arith.cmpi eq, %arg1, %c0_i32 : i32
    %1 = arith.extui %0 : i1 to i32
    %c0_i32_0 = arith.constant 0 : i32
    %2 = arith.cmpi ne, %1, %c0_i32_0 : i32
    scf.if %2 {
      %c0_28 = arith.constant 0 : index
      %c0_29 = arith.constant 0 : index
      %41 = vector.load %arg2[%c0_28, %c0_29] : memref<16x32xf32, #tpu.memory_space<vmem>>, vector<16x32xf32>
      %cst_30 = arith.constant dense<0.000000e+00> : vector<16xf32>
      %42 = vector.multi_reduction <add>, %41, %cst_30 [1] : vector<16x32xf32> to vector<16xf32>
      %43 = vector.shape_cast %42 : vector<16xf32> to vector<16x1xf32>
      %cst_31 = arith.constant 3.200000e+01 : f32
      %44 = vector.broadcast %cst_31 : f32 to vector<16x1xf32>
      %45 = arith.divf %43, %44 : vector<16x1xf32>
      %46 = vector.broadcast %45 : vector<16x1xf32> to vector<16x32xf32>
      %47 = arith.subf %41, %46 : vector<16x32xf32>
      %48 = arith.mulf %47, %47 : vector<16x32xf32>
      %cst_32 = arith.constant dense<0.000000e+00> : vector<16xf32>
      %49 = vector.multi_reduction <add>, %48, %cst_32 [1] : vector<16x32xf32> to vector<16xf32>
      %50 = vector.shape_cast %49 : vector<16xf32> to vector<16x1xf32>
      %cst_33 = arith.constant 3.200000e+01 : f32
      %51 = vector.broadcast %cst_33 : f32 to vector<16x1xf32>
      %52 = arith.divf %50, %51 : vector<16x1xf32>
      %cst_34 = arith.constant 9.99999974E-6 : f32
      %53 = vector.broadcast %cst_34 : f32 to vector<16x1xf32>
      %54 = arith.addf %52, %53 : vector<16x1xf32>
      %55 = math.rsqrt %54 : vector<16x1xf32>
      %56 = vector.broadcast %55 : vector<16x1xf32> to vector<16x32xf32>
      %57 = arith.mulf %47, %56 : vector<16x32xf32>
      %c0_35 = arith.constant 0 : index
      %c0_36 = arith.constant 0 : index
      %58 = vector.load %arg3[%c0_35, %c0_36] : memref<1x32xf32, #tpu.memory_space<vmem>>, vector<1x32xf32>
      %59 = vector.broadcast %58 : vector<1x32xf32> to vector<16x32xf32>
      %60 = arith.mulf %57, %59 : vector<16x32xf32>
      %c0_37 = arith.constant 0 : index
      %c0_38 = arith.constant 0 : index
      %61 = vector.load %arg4[%c0_37, %c0_38] : memref<1x32xf32, #tpu.memory_space<vmem>>, vector<1x32xf32>
      %62 = vector.broadcast %61 : vector<1x32xf32> to vector<16x32xf32>
      %63 = arith.addf %60, %62 : vector<16x32xf32>
      %64 = arith.truncf %63 : vector<16x32xf32> to vector<16x32xbf16>
      %c0_39 = arith.constant 0 : index
      %c0_40 = arith.constant 0 : index
      %65 = vector.load %arg10[%c0_39, %c0_40] : memref<16x32xbf16, #tpu.memory_space<vmem>>, vector<16x32xbf16>
      tpu.vector_store %arg10[%c0_39, %c0_40], %64 {strides = array<i32>} : memref<16x32xbf16, #tpu.memory_space<vmem>>, vector<16x32xbf16>,
      %cst_41 = arith.constant 0xFF800000 : f32
      %66 = vector.broadcast %cst_41 : f32 to vector<16x1xf32>
      %c0_42 = arith.constant 0 : index
      %c0_43 = arith.constant 0 : index
      %67 = vector.load %arg11[%c0_42, %c0_43] : memref<16x1xf32, #tpu.memory_space<vmem>>, vector<16x1xf32>
      tpu.vector_store %arg11[%c0_42, %c0_43], %66 {strides = array<i32>} : memref<16x1xf32, #tpu.memory_space<vmem>>, vector<16x1xf32>,
      %cst_44 = arith.constant 0.000000e+00 : f32
      %68 = vector.broadcast %cst_44 : f32 to vector<16x1xf32>
      %c0_45 = arith.constant 0 : index
      %c0_46 = arith.constant 0 : index
      %69 = vector.load %arg12[%c0_45, %c0_46] : memref<16x1xf32, #tpu.memory_space<vmem>>, vector<16x1xf32>
      tpu.vector_store %arg12[%c0_45, %c0_46], %68 {strides = array<i32>} : memref<16x1xf32, #tpu.memory_space<vmem>>, vector<16x1xf32>,
      %cst_47 = arith.constant 0.000000e+00 : f32
      %70 = vector.broadcast %cst_47 : f32 to vector<16x1xf32>
      %c0_48 = arith.constant 0 : index
      %c0_49 = arith.constant 0 : index
      %71 = vector.load %arg13[%c0_48, %c0_49] : memref<16x1xf32, #tpu.memory_space<vmem>>, vector<16x1xf32>
      tpu.vector_store %arg13[%c0_48, %c0_49], %70 {strides = array<i32>} : memref<16x1xf32, #tpu.memory_space<vmem>>, vector<16x1xf32>,
    } else {
    }
    %c0 = arith.constant 0 : index
    %c0_1 = arith.constant 0 : index
    %3 = vector.load %arg10[%c0, %c0_1] : memref<16x32xbf16, #tpu.memory_space<vmem>>, vector<16x32xbf16>
    %c0_2 = arith.constant 0 : index
    %c0_3 = arith.constant 0 : index
    %4 = vector.load %arg5[%c0_2, %c0_3] : memref<32x64xbf16, #tpu.memory_space<vmem>>, vector<32x64xbf16>
    %cst = arith.constant dense<0.000000e+00> : vector<16x64xf32>
    %5 = tpu.matmul %3, %4, %cst {dimension_numbers = #tpu.dot_dimension_numbers<[1], [0], [0], [1], [0, 0, 1, 1], [], []>} : vector<16x32xbf16>, vector<32x64xbf16>, vector<16x64xf32> -> vector<16x64xf32>
    %c0_4 = arith.constant 0 : index
    %c0_5 = arith.constant 0 : index
    %6 = vector.load %arg7[%c0_4, %c0_5] : memref<16x64xf32, #tpu.memory_space<vmem>>, vector<16x64xf32>
    tpu.vector_store %arg7[%c0_4, %c0_5], %5 {strides = array<i32>} : memref<16x64xf32, #tpu.memory_space<vmem>>, vector<16x64xf32>,
    %c0_6 = arith.constant 0 : index
    %c0_7 = arith.constant 0 : index
    %7 = vector.load %arg6[%c0_6, %c0_7] : memref<16x1xi32, #tpu.memory_space<vmem>>, vector<16x1xi32>
    %8 = tpu.iota {dimensions = array<i32: 1>} : vector<16x64xi32>
    %c64_i32 = arith.constant 64 : i32
    %9 = arith.muli %arg1, %c64_i32 : i32
    %10 = vector.broadcast %9 : i32 to vector<16x64xi32>
    %11 = arith.addi %8, %10 : vector<16x64xi32>
    %c0_8 = arith.constant 0 : index
    %c0_9 = arith.constant 0 : index
    %12 = vector.load %arg11[%c0_8, %c0_9] : memref<16x1xf32, #tpu.memory_space<vmem>>, vector<16x1xf32>
    %cst_10 = arith.constant dense<0xFF800000> : vector<16xf32>
    %13 = vector.multi_reduction <maximumf>, %5, %cst_10 [1] : vector<16x64xf32> to vector<16xf32>
    %14 = vector.shape_cast %13 : vector<16xf32> to vector<16x1xf32>
    %15 = arith.maximumf %12, %14 : vector<16x1xf32>
    %c0_11 = arith.constant 0 : index
    %c0_12 = arith.constant 0 : index
    %16 = vector.load %arg11[%c0_11, %c0_12] : memref<16x1xf32, #tpu.memory_space<vmem>>, vector<16x1xf32>
    %17 = arith.subf %16, %15 : vector<16x1xf32>
    %18 = math.exp %17 : vector<16x1xf32>
    %c0_13 = arith.constant 0 : index
    %c0_14 = arith.constant 0 : index
    %19 = vector.load %arg12[%c0_13, %c0_14] : memref<16x1xf32, #tpu.memory_space<vmem>>, vector<16x1xf32>
    %20 = arith.mulf %18, %19 : vector<16x1xf32>
    %21 = vector.broadcast %15 : vector<16x1xf32> to vector<16x64xf32>
    %22 = arith.subf %5, %21 : vector<16x64xf32>
    %23 = math.exp %22 : vector<16x64xf32>
    %cst_15 = arith.constant dense<0.000000e+00> : vector<16xf32>
    %24 = vector.multi_reduction <add>, %23, %cst_15 [1] : vector<16x64xf32> to vector<16xf32>
    %25 = vector.shape_cast %24 : vector<16xf32> to vector<16x1xf32>
    %26 = arith.addf %20, %25 : vector<16x1xf32>
    %c0_16 = arith.constant 0 : index
    %c0_17 = arith.constant 0 : index
    %27 = vector.load %arg12[%c0_16, %c0_17] : memref<16x1xf32, #tpu.memory_space<vmem>>, vector<16x1xf32>
    tpu.vector_store %arg12[%c0_16, %c0_17], %26 {strides = array<i32>} : memref<16x1xf32, #tpu.memory_space<vmem>>, vector<16x1xf32>,
    %c0_18 = arith.constant 0 : index
    %c0_19 = arith.constant 0 : index
    %28 = vector.load %arg11[%c0_18, %c0_19] : memref<16x1xf32, #tpu.memory_space<vmem>>, vector<16x1xf32>
    tpu.vector_store %arg11[%c0_18, %c0_19], %15 {strides = array<i32>} : memref<16x1xf32, #tpu.memory_space<vmem>>, vector<16x1xf32>,
    %c0_20 = arith.constant 0 : index
    %c0_21 = arith.constant 0 : index
    %29 = vector.load %arg13[%c0_20, %c0_21] : memref<16x1xf32, #tpu.memory_space<vmem>>, vector<16x1xf32>
    %30 = vector.broadcast %7 : vector<16x1xi32> to vector<16x64xi32>
    %31 = arith.cmpi eq, %11, %30 : vector<16x64xi32>
    %cst_22 = arith.constant 0.000000e+00 : f32
    %32 = vector.broadcast %cst_22 : f32 to vector<16x64xf32>
    %33 = arith.select %31, %5, %32 : vector<16x64xi1>, vector<16x64xf32>
    %cst_23 = arith.constant dense<0.000000e+00> : vector<16xf32>
    %34 = vector.multi_reduction <add>, %33, %cst_23 [1] : vector<16x64xf32> to vector<16xf32>
    %35 = vector.shape_cast %34 : vector<16xf32> to vector<16x1xf32>
    %36 = arith.addf %29, %35 : vector<16x1xf32>
    %c0_24 = arith.constant 0 : index
    %c0_25 = arith.constant 0 : index
    %37 = vector.load %arg13[%c0_24, %c0_25] : memref<16x1xf32, #tpu.memory_space<vmem>>, vector<16x1xf32>
    tpu.vector_store %arg13[%c0_24, %c0_25], %36 {strides = array<i32>} : memref<16x1xf32, #tpu.memory_space<vmem>>, vector<16x1xf32>,
    %c0_i32_26 = arith.constant 0 : i32
    %38 = arith.cmpi eq, %arg1, %c0_i32_26 : i32
    %39 = arith.extui %38 : i1 to i32
    %c0_i32_27 = arith.constant 0 : i32
    %40 = arith.cmpi ne, %39, %c0_i32_27 : i32
    scf.if %40 {
      %c0_i32_28 = arith.constant 0 : i32
      %41 = vector.broadcast %c0_i32_28 : i32 to vector<16x1xi32>
      %42 = arith.cmpi sge, %7, %41 : vector<16x1xi32>
      %43 = arith.extui %42 : vector<16x1xi1> to vector<16x1xi32>
      %44 = arith.sitofp %43 : vector<16x1xi32> to vector<16x1xf32>
      %c0_29 = arith.constant 0 : index
      %c0_30 = arith.constant 0 : index
      %45 = vector.load %arg11[%c0_29, %c0_30] : memref<16x1xf32, #tpu.memory_space<vmem>>, vector<16x1xf32>
      %c0_31 = arith.constant 0 : index
      %c0_32 = arith.constant 0 : index
      %46 = vector.load %arg12[%c0_31, %c0_32] : memref<16x1xf32, #tpu.memory_space<vmem>>, vector<16x1xf32>
      %47 = math.log %46 : vector<16x1xf32>
      %48 = arith.addf %45, %47 : vector<16x1xf32>
      %c0_33 = arith.constant 0 : index
      %c0_34 = arith.constant 0 : index
      %49 = vector.load %arg13[%c0_33, %c0_34] : memref<16x1xf32, #tpu.memory_space<vmem>>, vector<16x1xf32>
      %50 = arith.subf %48, %49 : vector<16x1xf32>
      %51 = arith.mulf %50, %44 : vector<16x1xf32>
      %c0_35 = arith.constant 0 : index
      %c0_36 = arith.constant 0 : index
      %52 = vector.load %arg8[%c0_35, %c0_36] : memref<16x1xf32, #tpu.memory_space<vmem>>, vector<16x1xf32>
      tpu.vector_store %arg8[%c0_35, %c0_36], %51 {strides = array<i32>} : memref<16x1xf32, #tpu.memory_space<vmem>>, vector<16x1xf32>,
      %c0_37 = arith.constant 0 : index
      %c0_38 = arith.constant 0 : index
      %53 = vector.load %arg9[%c0_37, %c0_38] : memref<16x1xf32, #tpu.memory_space<vmem>>, vector<16x1xf32>
      tpu.vector_store %arg9[%c0_37, %c0_38], %44 {strides = array<i32>} : memref<16x1xf32, #tpu.memory_space<vmem>>, vector<16x1xf32>,
    } else {
    }
    return
  }
  func.func @transform_0(%arg0: i32, %arg1: i32) -> (i32, i32) {
    %c0_i32 = arith.constant 0 : i32
    %c0_i32_0 = arith.constant 0 : i32
    return %arg0, %c0_i32 : i32, i32
  }
  func.func @transform_1(%arg0: i32, %arg1: i32) -> (i32, i32) {
    %c0_i32 = arith.constant 0 : i32
    %c0_i32_0 = arith.constant 0 : i32
    %c0_i32_1 = arith.constant 0 : i32
    return %c0_i32, %c0_i32_0 : i32, i32
  }
  func.func @transform_2(%arg0: i32, %arg1: i32) -> (i32, i32) {
    %c0_i32 = arith.constant 0 : i32
    %c0_i32_0 = arith.constant 0 : i32
    %c0_i32_1 = arith.constant 0 : i32
    return %c0_i32, %c0_i32_0 : i32, i32
  }
  func.func @transform_3(%arg0: i32, %arg1: i32) -> (i32, i32) {
    %c0_i32 = arith.constant 0 : i32
    %c0_i32_0 = arith.constant 0 : i32
    return %c0_i32, %arg1 : i32, i32
  }
  func.func @transform_4(%arg0: i32, %arg1: i32) -> (i32, i32) {
    %c0_i32 = arith.constant 0 : i32
    %c0_i32_0 = arith.constant 0 : i32
    return %arg0, %c0_i32 : i32, i32
  }
  func.func @transform_5(%arg0: i32, %arg1: i32) -> (i32, i32) {
    %c0_i32 = arith.constant 0 : i32
    return %arg0, %arg1 : i32, i32
  }
  func.func @transform_6(%arg0: i32, %arg1: i32) -> (i32, i32) {
    %c0_i32 = arith.constant 0 : i32
    %c0_i32_0 = arith.constant 0 : i32
    return %arg0, %c0_i32 : i32, i32
  }
  func.func @transform_7(%arg0: i32, %arg1: i32) -> (i32, i32) {
    %c0_i32 = arith.constant 0 : i32
    %c0_i32_0 = arith.constant 0 : i32
    return %arg0, %c0_i32 : i32, i32
  }
}

</mosaic_0001>

<llo_original>
// kernel: gpt_forward.11
$region0: #{gpt_forward.11}
  #allocation0 [shape = 'u32[]', space=smem, size = 0x4, offset = 0x4, fixed_abs, tag = 'smem constant byte address 0x4 - core index']
  #allocation1 [shape = 'u32[72,128]{1,0:T(1,128)}', space=vmem, size = 0x9000, scoped, tag = 'internal scratch']
  #allocation2 [shape = 'bf16[16,32]{1,0:T(8,128)(2,1)}', space=vmem, size = 0x1000, scoped, tag = 'scratch operand']
  %s0 = inlined_call_operand.vmem [shape: f32[16,32], index: 0, kind: input, shape index: {}]
  %s1 = inlined_call_operand.vmem [shape: f32[1,32], index: 1, kind: input, shape index: {}]
  %s2 = inlined_call_operand.vmem [shape: f32[1,32], index: 2, kind: input, shape index: {}]
  %s3 = inlined_call_operand.vmem [shape: bf16[32,96], index: 3, kind: input, shape index: {}]
  %s4 = inlined_call_operand.vmem [shape: f32[1,96], index: 4, kind: input, shape index: {}]
  %s5 = inlined_call_operand.vmem [shape: bf16[16,96], index: 5, kind: output, shape index: {}]
  %s6 = sld [smem:[#allocation0]]
  $region34: #{gpt_forward.11} parent=0
    _
  %s8 = ssub.s32 1, %s6
  %s9 = scalar_select 0, %s8, %s6
  // Predicated region
  $region2: #{gpt_forward.11} parent=0 // pred_check
    _
  $region3: #{gpt_forward.11} parent=0 // pred_check_branch
    %11 = sbr.rel (0) target = $region5
  $region4: #{gpt_forward.11} parent=0 // pred_region
    _
  $region5: #{gpt_forward.11} parent=0 // pred_fallthru
    _
  // Predicated region
  $region6: #{gpt_forward.11} parent=0 // pred_check
    _
  $region7: #{gpt_forward.11} parent=0 // pred_check_branch
    %13 = sbr.rel (0) target = $region9
  $region8: #{gpt_forward.11} parent=0 // pred_region
    _
  $region9: #{gpt_forward.11} parent=0 // pred_fallthru
    _
  // Predicated region
  $region10: #{gpt_forward.11} parent=0 // pred_check
    _
  $region11: #{gpt_forward.11} parent=0 // pred_check_branch
    %15 = sbr.rel (0) target = $region13
  $region12: #{gpt_forward.11} parent=0 // pred_region
    _
  $region13: #{gpt_forward.11} parent=0 // pred_fallthru
    _
  // Predicated region
  $region14: #{gpt_forward.11} parent=0 // pred_check
    _
  $region15: #{gpt_forward.11} parent=0 // pred_check_branch
    %17 = sbr.rel (0) target = $region17
  $region16: #{gpt_forward.11} parent=0 // pred_region
    _
  $region17: #{gpt_forward.11} parent=0 // pred_fallthru
    _
  // Predicated region
  $region18: #{gpt_forward.11} parent=0 // pred_check
    _
  $region19: #{gpt_forward.11} parent=0 // pred_check_branch
    %19 = sbr.rel (0) target = $region21
  $region20: #{gpt_forward.11} parent=0 // pred_region
    _
  $region21: #{gpt_forward.11} parent=0 // pred_fallthru
    _
  %p21 = scmp.eq.s32.totalorder 0, 0
  // Predicated region
  $region22: #{gpt_forward.11} parent=0 // pred_check
    %p22 = pneg %p21
  $region23: #{gpt_forward.11} parent=0 // pred_check_branch
    %24 = sbr.rel (%p22) target = $region25
  $region24: #{gpt_forward.11} parent=0 // pred_region
    %v25 = vld [vmem:[%s0] sm:$0xff]
    %v26 = vld [vmem:[%s0 + $0x8] sm:$0xff]
    %vm27 = vcmask 261120
    %v28 = vsel %vm27, %v25, 0.0
    %29 = vadd.xlane.f32.xlu0 %v28
    %v30 = vpop.xlane.xlu0 %29
    %v31 = vsel %vm27, %v26, 0.0
    %32 = vadd.xlane.f32.xlu0 %v31
    %v33 = vpop.xlane.xlu0 %32
    %v34 = vrcp.pop 32.0
    %v35 = vmul.f32 32.0, %v34
    %v36 = vsub.f32 1.0, %v35
    %v37 = vmul.f32 %v34, %v36
    %v38 = vadd.f32 %v34, %v37
    %vm39 = vweird.f32 %v34
    %v40 = vsel %vm39, %v34, %v38
    %v41 = vmul.f32 %v30, %v40
    %v42 = vmul.f32 %v33, %v40
    %v43 = vsub.f32 %v25, %v41
    %v44 = vsub.f32 %v26, %v42
    %v45 = vmul.f32 %v43, %v43
    %v46 = vmul.f32 %v44, %v44
    %v47 = vsel %vm27, %v45, 0.0
    %48 = vadd.xlane.f32.xlu0 %v47
    %v49 = vpop.xlane.xlu0 %48
    %v50 = vsel %vm27, %v46, 0.0
    %51 = vadd.xlane.f32.xlu0 %v50
    %v52 = vpop.xlane.xlu0 %51
    %v53 = vmul.f32 %v49, %v40
    %v54 = vmul.f32 %v52, %v40
    %v55 = vadd.f32 %v53, 1e-05
    %v56 = vadd.f32 %v54, 1e-05
    %v57 = vrsqrt.pop %v55
    %v58 = vmul.f32 %v57, %v55
    %v59 = vmul.f32 %v58, %v57
    %v60 = vmul.f32 0.5, %v59
    %v61 = vsub.f32 1.5, %v60
    %v62 = vmul.f32 %v57, %v61
    %vm63 = vweird.f32 %v55
    %vm64 = vweird.f32 %v57
    %vm65 = vmor %vm63, %vm64
    %v66 = vsel %vm65, %v57, %v62
    %v67 = vrsqrt.pop %v56
    %v68 = vmul.f32 %v67, %v56
    %v69 = vmul.f32 %v68, %v67
    %v70 = vmul.f32 0.5, %v69
    %v71 = vsub.f32 1.5, %v70
    %v72 = vmul.f32 %v67, %v71
    %vm73 = vweird.f32 %v56
    %vm74 = vweird.f32 %v67
    %vm75 = vmor %vm73, %vm74
    %v76 = vsel %vm75, %v67, %v72
    %v77 = vmul.f32 %v43, %v66
    %v78 = vmul.f32 %v44, %v76
    %v79 = vld [vmem:[%s1] sm:$0x1]
    %v81 = vperm.slane %v79, 0
    %v83 = vmul.f32 %v77, %v81
    %v84 = vmul.f32 %v78, %v81
    %v85 = vld [vmem:[%s2] sm:$0x1]
    %v87 = vperm.slane %v85, 0
    %v89 = vadd.f32 %v83, %v87
    %v90 = vadd.f32 %v84, %v87
    %v91 = vpack.c.bf16 %v89, %v89
    %v92 = vpack.c.bf16 %v90, %v90
    %vm93 = vcmask 257024
    %94 = vst.msk [vmem:[#allocation2] sm:$0xf] %vm93, %v91
    %95 = vst.msk [vmem:[#allocation2 + $0x4] sm:$0xf] %vm93, %v92
  $region25: #{gpt_forward.11} parent=0 // pred_fallthru
    _
  %v96 = vld [vmem:[#allocation2] sm:$0xf]
  %v97 = vld [vmem:[#allocation2 + $0x4] sm:$0xf]
  %v98 = vld [vmem:[%s3] sm:$0xf]
  %v99 = vld [vmem:[%s3 + $0x4] sm:$0xf]
  %v100 = vld [vmem:[%s3 + $0x8] sm:$0xf]
  %v101 = vld [vmem:[%s3 + $0xc] sm:$0xf]
  %v102 = vld [vmem:[%s4] sm:$0x1]
  %v104 = vperm.slane %v102, 0
  %v108 = vunpack.c.l.b16 %v96
  %v109 = vunpack.c.l.b16 %v97
  %v110 = vpack.c.b16 %v109, %v108
  %v115 = vunpack.c.l.b16 %v98
  %v116 = vunpack.c.l.b16 %v99
  %v117 = vunpack.c.l.b16 %v100
  %v118 = vunpack.c.l.b16 %v101
  %v119 = vpack.c.b16 %v116, %v115
  %v120 = vpack.c.b16 %v118, %v117
  %vm123 = vcmask 261120
  %v125 = vsel %vm123, %v110, 0
  %127 = vmatpush.bf16.msra.mxu0 0
  %128 = vmatpush.bf16.msra.mxu0 0
  %129 = vmatpush.bf16.msra.mxu0 0
  %130 = vmatpush.bf16.msra.mxu0 0
  %131 = vmatpush.bf16.msra.mxu0 0
  %132 = vmatpush.bf16.msra.mxu0 0
  %133 = vmatpush.bf16.msra.mxu0 %v120
  %134 = vmatpush.bf16.msra.mxu0 %v119
  %135 = vmatmul.bf16.gmra.mxu0 %v125
  %v136 = vpop.f32.mrf.mxu0
  %v137 = vadd.f32 %v104, %v136
  %v138 = vpop.f32.mrf.mxu0
  %v139 = vadd.f32 %v104, %v138
  %140 = vdwg.mxu0
  %v141 = vpack.c.bf16 %v137, %v137
  %v142 = vpack.c.bf16 %v139, %v139
  %vm143 = vcmask 781312
  %144 = vst.msk [vmem:[%s5] sm:$0xf] %vm143, %v141
  %145 = vst.msk [vmem:[%s5 + $0x4] sm:$0xf] %vm143, %v142
  // Predicated region
  $region26: #{gpt_forward.11} parent=0 // pred_check
    _
  $region27: #{gpt_forward.11} parent=0 // pred_check_branch
    %147 = sbr.rel (0) target = $region29
  $region28: #{gpt_forward.11} parent=0 // pred_region
    _
  $region29: #{gpt_forward.11} parent=0 // pred_fallthru
    _
  // Predicated region
  $region30: #{gpt_forward.11} parent=0 // pred_check
    _
  $region31: #{gpt_forward.11} parent=0 // pred_check_branch
    %149 = sbr.rel (0) target = $region33
  $region32: #{gpt_forward.11} parent=0 // pred_region
    _
  $region33: #{gpt_forward.11} parent=0 // pred_fallthru
    _

// kernel: gpt_forward.13
$region0: #{gpt_forward.13}
  #allocation0 [shape = 'u32[]', space=smem, size = 0x4, offset = 0x4, fixed_abs, tag = 'smem constant byte address 0x4 - core index']
  #allocation1 [shape = 'u32[72,128]{1,0:T(1,128)}', space=vmem, size = 0x9000, scoped, tag = 'internal scratch']
  #allocation2 [shape = 'f32[16,32]{1,0:T(8,128)}', space=vmem, size = 0x2000, scoped, tag = 'scratch operand']
  %s0 = inlined_call_operand.vmem [shape: bf16[2,16,16], index: 0, kind: input, shape index: {}]
  %s1 = inlined_call_operand.vmem [shape: bf16[2,16,32], index: 1, kind: input, shape index: {}]
  %s2 = inlined_call_operand.vmem [shape: f32[1,32], index: 2, kind: input, shape index: {}]
  %s3 = inlined_call_operand.vmem [shape: f32[16,32], index: 3, kind: input, shape index: {}]
  %s4 = inlined_call_operand.vmem [shape: f32[16,32], index: 4, kind: output, shape index: {}]
  %s5 = sld [smem:[#allocation0]]
  $region57: #{gpt_forward.13} parent=0
    _
  %s7 = ssub.s32 1, %s5
  %s8 = scalar_select 0, %s7, %s5
  loop: start=0, step=1, limit=4
  $region2: #{gpt_forward.13} parent=0 // loop_pre_header
    _
  $region3: #{gpt_forward.13} parent=0 // loop_header
    %s10 = sphi 0, %s14
    %p11 = scmp.ge.s32.totalorder %s10, 4
    %s17 = sphi 0, %s29
    %s18 = sphi 0, %s25
    %s19 = sphi 0, %s17
    %s20 = sphi 0, %s18
    %s21 = sphi 0, %s19
    %s22 = sphi 0, %s20
    %s34 = sphi 0, %s36
    %s37 = sphi 0, %s34
    %s38 = sphi 0, %s37
    %s54 = sphi 0, %s38
    %s60 = sphi 0, %s62
    %s63 = sphi 0, %s60
    %s64 = sphi 0, %s63
    %s80 = sphi 0, %s64
    %s84 = sphi 0, %s84
    %s86 = sphi 0, %s84
    %s87 = sphi 0, %s86
    %s101 = sphi 0, %s87
    %s107 = sphi 0, %s109
    %s110 = sphi 0, %s107
    %s111 = sphi 0, %s110
    %s127 = sphi 0, %s111
    %s133 = sphi 0, %s135
    %s136 = sphi 0, %s133
    %s137 = sphi 0, %s136
    %s153 = sphi 0, %s137
  $region4: #{gpt_forward.13} parent=0 // loop_header_branch
    %13 = sbr.rel (%p11) target = $region8
  $region5: #{gpt_forward.13} parent=0 // loop_body
    %s15 = ssub.s32 %s10, 1
    %s16 = ssub.s32 %s10, 2
    %s23 = sadd.s32 1, %s18
    %p24 = scmp.ge.s32.totalorder %s23, 2
    %s25 = scalar_select %p24, 0, %s23
    %s26 = sadd.s32 1, %s17
    %s27 = scalar_select %p24, %s26, %s17
    %p28 = scmp.ge.s32.totalorder %s27, 1
    %s29 = scalar_select %p28, 0, %s27
    %s30 = ssub.s32 %s18, %s25
    %s31 = ssub.s32 %s17, %s29
    %s32 = sor.u32 %s30, %s31
    %p33 = scmp.eq.s32.totalorder %s32, 0
    %s35 = sadd.s32 %s34, 1
    %s36 = scalar_select %p33, %s34, %s35
    %p39 = pneg %p33
    %p40 = scmp.eq.s32.totalorder %s10, 1
    %p41 = por %p39, %p40
    %p42 = scmp.ne.s32.totalorder %s34, %s37
    %p43 = scmp.eq.s32.totalorder %s10, 0
    %p44 = por %p42, %p43
    %p45 = scmp.ne.s32.totalorder %s34, %s37
    %p46 = scmp.eq.s32.totalorder %s15, 1
    %p47 = por %p45, %p46
    %p48 = scmp.ne.s32.totalorder %s37, %s38
    %p49 = scmp.eq.s32.totalorder %s15, 0
    %p50 = por %p48, %p49
    %p51 = scmp.ne.s32.totalorder %s37, %s38
    %p52 = scmp.eq.s32.totalorder %s16, 1
    %p53 = por %p51, %p52
    %p55 = scmp.ne.s32.totalorder %s38, %s54
    %p56 = scmp.eq.s32.totalorder %s16, 0
    %p57 = por %p55, %p56
    %s58 = ssub.s32 %s18, %s25
    %p59 = scmp.eq.s32.totalorder %s58, 0
    %s61 = sadd.s32 %s60, 1
    %s62 = scalar_select %p59, %s60, %s61
    %p65 = pneg %p59
    %p66 = scmp.eq.s32.totalorder %s10, 1
    %p67 = por %p65, %p66
    %p68 = scmp.ne.s32.totalorder %s60, %s63
    %p69 = scmp.eq.s32.totalorder %s10, 0
    %p70 = por %p68, %p69
    %p71 = scmp.ne.s32.totalorder %s60, %s63
    %p72 = scmp.eq.s32.totalorder %s15, 1
    %p73 = por %p71, %p72
    %p74 = scmp.ne.s32.totalorder %s63, %s64
    %p75 = scmp.eq.s32.totalorder %s15, 0
    %p76 = por %p74, %p75
    %p77 = scmp.ne.s32.totalorder %s63, %s64
    %p78 = scmp.eq.s32.totalorder %s16, 1
    %p79 = por %p77, %p78
    %p81 = scmp.ne.s32.totalorder %s64, %s80
    %p82 = scmp.eq.s32.totalorder %s16, 0
    %p83 = por %p81, %p82
    %s85 = sadd.s32 %s84, 1
    %p88 = scmp.eq.s32.totalorder %s10, 1
    %p89 = scmp.ne.s32.totalorder %s84, %s86
    %p90 = scmp.eq.s32.totalorder %s10, 0
    %p91 = por %p89, %p90
    %p92 = scmp.ne.s32.totalorder %s84, %s86
    %p93 = scmp.eq.s32.totalorder %s15, 1
    %p94 = por %p92, %p93
    %p95 = scmp.ne.s32.totalorder %s86, %s87
    %p96 = scmp.eq.s32.totalorder %s15, 0
    %p97 = por %p95, %p96
    %p98 = scmp.ne.s32.totalorder %s86, %s87
    %p99 = scmp.eq.s32.totalorder %s16, 1
    %p100 = por %p98, %p99
    %p102 = scmp.ne.s32.totalorder %s87, %s101
    %p103 = scmp.eq.s32.totalorder %s16, 0
    %p104 = por %p102, %p103
    %s105 = ssub.s32 %s17, %s29
    %p106 = scmp.eq.s32.totalorder %s105, 0
    %s108 = sadd.s32 %s107, 1
    %s109 = scalar_select %p106, %s107, %s108
    %p112 = pneg %p106
    %p113 = scmp.eq.s32.totalorder %s10, 1
    %p114 = por %p112, %p113
    %p115 = scmp.ne.s32.totalorder %s107, %s110
    %p116 = scmp.eq.s32.totalorder %s10, 0
    %p117 = por %p115, %p116
    %p118 = scmp.ne.s32.totalorder %s107, %s110
    %p119 = scmp.eq.s32.totalorder %s15, 1
    %p120 = por %p118, %p119
    %p121 = scmp.ne.s32.totalorder %s110, %s111
    %p122 = scmp.eq.s32.totalorder %s15, 0
    %p123 = por %p121, %p122
    %p124 = scmp.ne.s32.totalorder %s110, %s111
    %p125 = scmp.eq.s32.totalorder %s16, 1
    %p126 = por %p124, %p125
    %p128 = scmp.ne.s32.totalorder %s111, %s127
    %p129 = scmp.eq.s32.totalorder %s16, 0
    %p130 = por %p128, %p129
    %s131 = ssub.s32 %s17, %s29
    %p132 = scmp.eq.s32.totalorder %s131, 0
    %s134 = sadd.s32 %s133, 1
    %s135 = scalar_select %p132, %s133, %s134
    %p138 = pneg %p132
    %p139 = scmp.eq.s32.totalorder %s10, 1
    %p140 = por %p138, %p139
    %p141 = scmp.ne.s32.totalorder %s133, %s136
    %p142 = scmp.eq.s32.totalorder %s10, 0
    %p143 = por %p141, %p142
    %p144 = scmp.ne.s32.totalorder %s133, %s136
    %p145 = scmp.eq.s32.totalorder %s15, 1
    %p146 = por %p144, %p145
    %p147 = scmp.ne.s32.totalorder %s136, %s137
    %p148 = scmp.eq.s32.totalorder %s15, 0
    %p149 = por %p147, %p148
    %p150 = scmp.ne.s32.totalorder %s136, %s137
    %p151 = scmp.eq.s32.totalorder %s16, 1
    %p152 = por %p150, %p151
    %p154 = scmp.ne.s32.totalorder %s137, %s153
    %p155 = scmp.eq.s32.totalorder %s16, 0
    %p156 = por %p154, %p155
    %p157 = scmp.le.s32.totalorder 1, %s10
    %p158 = scmp.lt.s32.totalorder %s10, 3
    %p159 = pnand %p157, %p158
    %p160 = pneg %p159
    // Predicated region
    $region9: #{gpt_forward.13} parent=5 // pred_check
      _
    $region10: #{gpt_forward.13} parent=5 // pred_check_branch
      %162 = sbr.rel (%p159) target = $region12
    $region11: #{gpt_forward.13} parent=5 // pred_region
      %s163 = ssub.s32 %s10, 1
      // Predicated region
      $region13: #{gpt_forward.13} parent=11 // pred_check
        %p164 = pneg %p97
      $region14: #{gpt_forward.13} parent=11 // pred_check_branch
        %166 = sbr.rel (%p164) target = $region16
      $region15: #{gpt_forward.13} parent=11 // pred_region
        _
      $region16: #{gpt_forward.13} parent=11 // pred_fallthru
        _
      // Predicated region
      $region17: #{gpt_forward.13} parent=11 // pred_check
        %p167 = pneg %p123
      $region18: #{gpt_forward.13} parent=11 // pred_check_branch
        %169 = sbr.rel (%p167) target = $region20
      $region19: #{gpt_forward.13} parent=11 // pred_region
        %s170 = smul.u32 2, %s19
        %p171 = scmp.lt.s32.totalorder %s170, 1
        %s172 = scalar_select %p171, %s170, 1
        %s173 = smul.addr %s172, 8
        %s174 = scalar_lea.vmem %s3, %s173
        %s175 = smul.u32 2, %s19
      $region20: #{gpt_forward.13} parent=11 // pred_fallthru
        _
    $region12: #{gpt_forward.13} parent=5 // pred_fallthru
      _
    %p176 = scmp.lt.s32.totalorder %s10, 2
    // Predicated region
    $region21: #{gpt_forward.13} parent=5 // pred_check
      %p177 = pneg %p176
    $region22: #{gpt_forward.13} parent=5 // pred_check_branch
      %179 = sbr.rel (%p177) target = $region24
    $region23: #{gpt_forward.13} parent=5 // pred_region
      // Predicated region
      $region25: #{gpt_forward.13} parent=23 // pred_check
        %p180 = pneg %p44
      $region26: #{gpt_forward.13} parent=23 // pred_check_branch
        %182 = sbr.rel (%p180) target = $region28
      $region27: #{gpt_forward.13} parent=23 // pred_region
        %s183 = smul.u32 2, %s17
        %p184 = scmp.lt.s32.totalorder %s18, 1
        %s185 = scalar_select %p184, %s18, 1
        %p186 = scmp.lt.s32.totalorder %s183, 1
        %s187 = scalar_select %p186, %s183, 1
        %s188 = smul.addr %s185, 2
        %s189 = sadd.s32 %s187, %s188
        %s190 = smul.addr %s189, 4
        %s191 = scalar_lea.vmem %s0, %s190
        %s192 = smul.u32 2, %s17
      $region28: #{gpt_forward.13} parent=23 // pred_fallthru
        _
      // Predicated region
      $region29: #{gpt_forward.13} parent=23 // pred_check
        %p193 = pneg %p70
      $region30: #{gpt_forward.13} parent=23 // pred_check_branch
        %195 = sbr.rel (%p193) target = $region32
      $region31: #{gpt_forward.13} parent=23 // pred_region
        %p196 = scmp.lt.s32.totalorder %s18, 1
        %s197 = scalar_select %p196, %s18, 1
        %s198 = smul.addr %s197, 2
        %s199 = smul.addr %s198, 4
        %s200 = scalar_lea.vmem %s1, %s199
      $region32: #{gpt_forward.13} parent=23 // pred_fallthru
        _
    $region24: #{gpt_forward.13} parent=5 // pred_fallthru
      _
    %p201 = scmp.le.s32.totalorder 1, %s10
    %p202 = scmp.lt.s32.totalorder %s10, 3
    %p203 = pnand %p201, %p202
    %p204 = pneg %p203
    // Predicated region
    $region33: #{gpt_forward.13} parent=5 // pred_check
      _
    $region34: #{gpt_forward.13} parent=5 // pred_check_branch
      %206 = sbr.rel (%p203) target = $region36
    $region35: #{gpt_forward.13} parent=5 // pred_region
      %s207 = ssub.s32 %s10, 1
      %s208 = smul.u32 2, %s19
      %p209 = scmp.lt.s32.totalorder %s20, 1
      %s210 = scalar_select %p209, %s20, 1
      %p211 = scmp.lt.s32.totalorder %s208, 1
      %s212 = scalar_select %p211, %s208, 1
      %s213 = smul.addr %s210, 2
      %s214 = sadd.s32 %s212, %s213
      %s215 = smul.addr %s214, 4
      %s216 = scalar_lea.vmem %s0, %s215
      %p217 = pneg %p50
      %p218 = pneg %p47
      %p219 = scmp.lt.s32.totalorder %s20, 1
      %s220 = scalar_select %p219, %s20, 1
      %s221 = smul.addr %s220, 2
      %s222 = smul.addr %s221, 4
      %s223 = scalar_lea.vmem %s1, %s222
      %p224 = pneg %p76
      %p225 = pneg %p73
      %p226 = pneg %p97
      %p227 = pneg %p94
      %s228 = smul.u32 2, %s19
      %p229 = scmp.lt.s32.totalorder %s228, 1
      %s230 = scalar_select %p229, %s228, 1
      %s231 = smul.addr %s230, 8
      %s232 = scalar_lea.vmem %s3, %s231
      %p233 = pneg %p123
      %p234 = pneg %p120
      %p235 = pneg %p149
      %p236 = pneg %p146
      %s237 = smul.u32 2, %s19
      %p238 = scmp.lt.s32.totalorder %s237, 1
      %s239 = scalar_select %p238, %s237, 1
      %s240 = smul.addr %s239, 8
      %s241 = scalar_lea.vmem %s4, %s240
      %s242 = smul.u32 2, %s19
      %p243 = scmp.lt.s32.totalorder %s20, 1
      %s244 = scalar_select %p243, %s20, 1
      %p245 = scmp.lt.s32.totalorder %s242, 1
      %s246 = scalar_select %p245, %s242, 1
      %s247 = smul.addr %s244, 2
      %s248 = sadd.s32 %s246, %s247
      %s249 = smul.addr %s248, 4
      %s250 = scalar_lea.vmem %s0, %s249
      %s251 = smul.u32 2, %s19
      %p252 = scmp.lt.s32.totalorder %s20, 1
      %s253 = scalar_select %p252, %s20, 1
      %s254 = smul.addr %s253, 2
      %s255 = smul.addr %s254, 4
      %s256 = scalar_lea.vmem %s1, %s255
      %s257 = smul.u32 2, %s19
      %p258 = scmp.lt.s32.totalorder %s257, 1
      %s259 = scalar_select %p258, %s257, 1
      %s260 = smul.addr %s259, 8
      %s261 = scalar_lea.vmem %s3, %s260
      %s262 = smul.u32 2, %s19
      %s263 = smul.u32 2, %s19
      %p264 = scmp.lt.s32.totalorder %s263, 1
      %s265 = scalar_select %p264, %s263, 1
      %s266 = smul.addr %s265, 8
      %s267 = scalar_lea.vmem %s4, %s266
      %s268 = smul.u32 2, %s19
      %p270 = scmp.eq.s32.totalorder %s20, 0
      // Predicated region
      $region37: #{gpt_forward.13} parent=35 // pred_check
        %p271 = pneg %p270
      $region38: #{gpt_forward.13} parent=35 // pred_check_branch
        %273 = sbr.rel (%p271) target = $region40
      $region39: #{gpt_forward.13} parent=35 // pred_region
        %vm274 = vcmask 261120
        %275 = vst.msk [vmem:[#allocation2] sm:$0xff] %vm274, 0.0
        %276 = vst.msk [vmem:[#allocation2 + $0x8] sm:$0xff] %vm274, 0.0
      $region40: #{gpt_forward.13} parent=35 // pred_fallthru
        _
      %v277 = vld [vmem:[#allocation2] sm:$0xff]
      %v278 = vld [vmem:[#allocation2 + $0x8] sm:$0xff]
      %v279 = vld [vmem:[%s250] sm:$0xf]
      %v280 = vld [vmem:[%s250 + $0x4] sm:$0xf]
      %v281 = vld [vmem:[%s256] sm:$0xf]
      %v282 = vld [vmem:[%s256 + $0x4] sm:$0xf]
      %v285 = vunpack.c.l.b16 %v279
      %v286 = vunpack.c.l.b16 %v280
      %v287 = vpack.c.b16 %v286, %v285
      %v290 = vunpack.c.l.b16 %v281
      %v291 = vunpack.c.l.b16 %v282
      %v292 = vpack.c.b16 %v291, %v290
      %vm294 = vcmask 130048
      %v296 = vsel %vm294, %v287, 0
      %298 = vmatpush.bf16.msra.mxu0 0
      %299 = vmatpush.bf16.msra.mxu0 0
      %300 = vmatpush.bf16.msra.mxu0 0
      %301 = vmatpush.bf16.msra.mxu0 0
      %302 = vmatpush.bf16.msra.mxu0 0
      %303 = vmatpush.bf16.msra.mxu0 0
      %304 = vmatpush.bf16.msra.mxu0 0
      %305 = vmatpush.bf16.msra.mxu0 %v292
      %306 = vmatmul.bf16.gmra.mxu0 %v296
      %v307 = vpop.f32.mrf.mxu0
      %v308 = vadd.f32 0.0, %v307
      %v309 = vpop.f32.mrf.mxu0
      %v310 = vadd.f32 0.0, %v309
      %311 = vdwg.mxu0
      %v312 = vadd.f32 %v277, %v308
      %v313 = vadd.f32 %v278, %v310
      %vm314 = vcmask 261120
      %315 = vst.msk [vmem:[#allocation2] sm:$0xff] %vm314, %v312
      %316 = vst.msk [vmem:[#allocation2 + $0x8] sm:$0xff] %vm314, %v313
      %p317 = scmp.eq.s32.totalorder %s20, 1
      // Predicated region
      $region41: #{gpt_forward.13} parent=35 // pred_check
        %p318 = pneg %p317
      $region42: #{gpt_forward.13} parent=35 // pred_check_branch
        %320 = sbr.rel (%p318) target = $region44
      $region43: #{gpt_forward.13} parent=35 // pred_region
        %v321 = vld [vmem:[#allocation2] sm:$0xff]
        %v322 = vld [vmem:[#allocation2 + $0x8] sm:$0xff]
        %v323 = vld [vmem:[%s2] sm:$0x1]
        %v325 = vperm.slane %v323, 0
        %v327 = vadd.f32 %v321, %v325
        %v328 = vadd.f32 %v322, %v325
        %v329 = vld [vmem:[%s261] sm:$0xff]
        %v330 = vld [vmem:[%s261 + $0x8] sm:$0xff]
        %v331 = vadd.f32 %v327, %v329
        %v332 = vadd.f32 %v328, %v330
        %333 = vst.msk [vmem:[%s267] sm:$0xff] %vm314, %v331
        %334 = vst.msk [vmem:[%s267 + $0x8] sm:$0xff] %vm314, %v332
      $region44: #{gpt_forward.13} parent=35 // pred_fallthru
        _
      %s335 = smul.u32 2, %s19
      %p336 = scmp.lt.s32.totalorder %s335, 1
      %s337 = scalar_select %p336, %s335, 1
      %s338 = smul.addr %s337, 8
      %s339 = scalar_lea.vmem %s4, %s338
      // Predicated region
      $region45: #{gpt_forward.13} parent=35 // pred_check
        %p340 = pneg %p146
      $region46: #{gpt_forward.13} parent=35 // pred_check_branch
        %342 = sbr.rel (%p340) target = $region48
      $region47: #{gpt_forward.13} parent=35 // pred_region
        %s343 = smul.u32 2, %s19
      $region48: #{gpt_forward.13} parent=35 // pred_fallthru
        _
      // Predicated region
      $region49: #{gpt_forward.13} parent=35 // pred_check
        %p344 = pneg %p146
      $region50: #{gpt_forward.13} parent=35 // pred_check_branch
        %346 = sbr.rel (%p344) target = $region52
      $region51: #{gpt_forward.13} parent=35 // pred_region
        %s347 = smul.u32 2, %s19
        %p348 = scmp.lt.s32.totalorder %s347, 1
        %s349 = scalar_select %p348, %s347, 1
        %s350 = smul.addr %s349, 8
        %s351 = scalar_lea.vmem %s4, %s350
      $region52: #{gpt_forward.13} parent=35 // pred_fallthru
        _
    $region36: #{gpt_forward.13} parent=5 // pred_fallthru
      _
    %p352 = scmp.le.s32.totalorder 2, %s10
    // Predicated region
    $region53: #{gpt_forward.13} parent=5 // pred_check
      %p353 = pneg %p352
    $region54: #{gpt_forward.13} parent=5 // pred_check_branch
      %355 = sbr.rel (%p353) target = $region56
    $region55: #{gpt_forward.13} parent=5 // pred_region
      %s356 = ssub.s32 %s10, 2
    $region56: #{gpt_forward.13} parent=5 // pred_fallthru
      _
  $region6: #{gpt_forward.13} parent=0 // loop_footer
    %s14 = sadd.s32 1, %s10
  $region7: #{gpt_forward.13} parent=0 // loop_footer_branch
    %9 = sbr.rel target = $region3
  $region8: #{gpt_forward.13} parent=0 // loop_exit
    _

// kernel: gpt_forward.12
$region0: #{gpt_forward.12}
  #allocation0 [shape = 'u32[]', space=smem, size = 0x4, offset = 0x4, fixed_abs, tag = 'smem constant byte address 0x4 - core index']
  #allocation1 [shape = 'u32[72,128]{1,0:T(1,128)}', space=vmem, size = 0x9000, scoped, tag = 'internal scratch']
  %s0 = inlined_call_operand.vmem [shape: bf16[2,8,96], index: 0, kind: input, shape index: {}]
  %s1 = inlined_call_operand.vmem [shape: bf16[2,16,16], index: 1, kind: output, shape index: {}]
  %s2 = sld [smem:[#allocation0]]
  $region74: #{gpt_forward.12} parent=0
    _
  %s4 = ssub.s32 1, %s2
  %s5 = scalar_select 0, %s4, %s2
  $region1: #{gpt_forward.12} parent=0
    #allocation2 [shape = 'u8[8192]{0}', space=vmem, size = 0x2000, scoped, tag = 'output window, operand 0']
    loop: start=0, step=1, limit=4
    $region2: #{gpt_forward.12} parent=1 // loop_pre_header
      _
    $region3: #{gpt_forward.12} parent=1 // loop_header
      %s7 = sphi 0, %s11
      %p8 = scmp.ge.s32.totalorder %s7, 4
      %s17 = sphi 0, %s19
      %s20 = sphi 0, %s17
      %s21 = sphi 0, %s20
      %s37 = sphi 0, %s21
      %s43 = sphi 0, %s45
      %s46 = sphi 0, %s43
      %s47 = sphi 0, %s46
      %s63 = sphi 0, %s47
    $region4: #{gpt_forward.12} parent=1 // loop_header_branch
      %10 = sbr.rel (%p8) target = $region8
    $region5: #{gpt_forward.12} parent=1 // loop_body
      %s12 = ssub.s32 %s7, 1
      %s13 = ssub.s32 %s7, 2
      %s14 = sadd.s32 %s7, 1
      %s15 = ssub.s32 %s7, %s14
      %p16 = scmp.eq.s32.totalorder %s15, 0
      %s18 = sadd.s32 %s17, 1
      %s19 = scalar_select %p16, %s17, %s18
      %p22 = pneg %p16
      %p23 = scmp.eq.s32.totalorder %s7, 1
      %p24 = por %p22, %p23
      %p25 = scmp.ne.s32.totalorder %s17, %s20
      %p26 = scmp.eq.s32.totalorder %s7, 0
      %p27 = por %p25, %p26
      %p28 = scmp.ne.s32.totalorder %s17, %s20
      %p29 = scmp.eq.s32.totalorder %s12, 1
      %p30 = por %p28, %p29
      %p31 = scmp.ne.s32.totalorder %s20, %s21
      %p32 = scmp.eq.s32.totalorder %s12, 0
      %p33 = por %p31, %p32
      %p34 = scmp.ne.s32.totalorder %s20, %s21
      %p35 = scmp.eq.s32.totalorder %s13, 1
      %p36 = por %p34, %p35
      %p38 = scmp.ne.s32.totalorder %s21, %s37
      %p39 = scmp.eq.s32.totalorder %s13, 0
      %p40 = por %p38, %p39
      %s41 = ssub.s32 %s7, %s14
      %p42 = scmp.eq.s32.totalorder %s41, 0
      %s44 = sadd.s32 %s43, 1
      %s45 = scalar_select %p42, %s43, %s44
      %p48 = pneg %p42
      %p49 = scmp.eq.s32.totalorder %s7, 1
      %p50 = por %p48, %p49
      %p51 = scmp.ne.s32.totalorder %s43, %s46
      %p52 = scmp.eq.s32.totalorder %s7, 0
      %p53 = por %p51, %p52
      %p54 = scmp.ne.s32.totalorder %s43, %s46
      %p55 = scmp.eq.s32.totalorder %s12, 1
      %p56 = por %p54, %p55
      %p57 = scmp.ne.s32.totalorder %s46, %s47
      %p58 = scmp.eq.s32.totalorder %s12, 0
      %p59 = por %p57, %p58
      %p60 = scmp.ne.s32.totalorder %s46, %s47
      %p61 = scmp.eq.s32.totalorder %s13, 1
      %p62 = por %p60, %p61
      %p64 = scmp.ne.s32.totalorder %s47, %s63
      %p65 = scmp.eq.s32.totalorder %s13, 0
      %p66 = por %p64, %p65
      %p67 = scmp.le.s32.totalorder 1, %s7
      %p68 = scmp.lt.s32.totalorder %s7, 3
      %p69 = pnand %p67, %p68
      %p70 = pneg %p69
      // Predicated region
      $region9: #{gpt_forward.12} parent=5 // pred_check
        _
      $region10: #{gpt_forward.12} parent=5 // pred_check_branch
        %72 = sbr.rel (%p69) target = $region12
      $region11: #{gpt_forward.12} parent=5 // pred_region
        %s73 = ssub.s32 %s7, 1
      $region12: #{gpt_forward.12} parent=5 // pred_fallthru
        _
      %p74 = scmp.lt.s32.totalorder %s7, 2
      // Predicated region
      $region13: #{gpt_forward.12} parent=5 // pred_check
        %p75 = pneg %p74
      $region14: #{gpt_forward.12} parent=5 // pred_check_branch
        %77 = sbr.rel (%p75) target = $region16
      $region15: #{gpt_forward.12} parent=5 // pred_region
        // Predicated region
        $region17: #{gpt_forward.12} parent=15 // pred_check
          %p78 = pneg %p27
        $region18: #{gpt_forward.12} parent=15 // pred_check_branch
          %80 = sbr.rel (%p78) target = $region20
        $region19: #{gpt_forward.12} parent=15 // pred_region
          %p81 = scmp.lt.s32.totalorder %s7, 1
          %s82 = scalar_select %p81, %s7, 1
          %s83 = smul.addr %s82, 4
          %s84 = scalar_lea.vmem %s0, %s83
        $region20: #{gpt_forward.12} parent=15 // pred_fallthru
          _
      $region16: #{gpt_forward.12} parent=5 // pred_fallthru
        _
      %p85 = scmp.le.s32.totalorder 1, %s7
      %p86 = scmp.lt.s32.totalorder %s7, 3
      %p87 = pnand %p85, %p86
      %p88 = pneg %p87
      // Predicated region
      $region21: #{gpt_forward.12} parent=5 // pred_check
        _
      $region22: #{gpt_forward.12} parent=5 // pred_check_branch
        %90 = sbr.rel (%p87) target = $region24
      $region23: #{gpt_forward.12} parent=5 // pred_region
        %s91 = ssub.s32 %s7, 1
        %p92 = scmp.lt.s32.totalorder %s12, 1
        %s93 = scalar_select %p92, %s12, 1
        %s94 = smul.addr %s93, 4
        %s95 = scalar_lea.vmem %s0, %s94
        %p96 = pneg %p33
        %p97 = pneg %p30
        %p98 = pneg %p59
        %p99 = pneg %p56
        %s100 = sand.u32 %s46, 1
        %s101 = sand.u32 %s46, 1
        %s102 = smul.addr %s101, 8
        %s103 = scalar_lea.vmem [#allocation2], %s102
        %p104 = scmp.lt.s32.totalorder %s12, 1
        %s105 = scalar_select %p104, %s12, 1
        %s106 = smul.addr %s105, 4
        %s107 = scalar_lea.vmem %s0, %s106
        %v109 = vld [vmem:[%s107] sm:$0xf]
        %v110 = vlaneseq
        %v111 = vshrl.u32 %v110, 7
        %v112 = vlaneseq
        %v113 = vand.u32 %v112, 127
        %vm114 = vcmp.le.s32.totalorder %v113, %v111
        %v116 = vunpack.c.l.b16 %v109
        %v117 = vpack.c.b16 %v116, %v116
        %118 = vrot.lane.b32.xlu0 %v117, 96
        %v119 = vpop.permute.xlu0 %118
        %vm120 = vcmask 130048
        %v122 = vsel %vm120, %v109, 0
        %v125 = vsel %vm120, %v119, 0
        %127 = vmatpush.bf16.xpose.msra.mxu0 0
        %128 = vmatpush.bf16.xpose.msra.mxu0 0
        %129 = vmatpush.bf16.xpose.msra.mxu0 0
        %130 = vmatpush.bf16.xpose.msra.mxu0 0
        %131 = vmatpush.bf16.xpose.msra.mxu0 0
        %132 = vmatpush.bf16.xpose.msra.mxu0 0
        %133 = vmatpush.bf16.xpose.msra.mxu0 0
        %134 = vmatpush.bf16.xpose.msra.mxu0 %v125
        %135 = vmatmul.bf16.gmra.mxu0 %v122
        %v136 = vpop.f32.mrf.mxu0
        %v137 = vadd.f32 0.0, %v136
        %v138 = vpop.f32.mrf.mxu0
        %139 = vdwg.mxu0
        %v140 = vmul.f32 %v137, 0.25
        %v141 = vsel %vm114, %v140, -1e+30
        %vm142 = vcmask 64512
        %v143 = vsel %vm142, %v141, -inf
        %144 = vmax.xlane.f32.xlu0 %v143
        %v145 = vpop.xlane.xlu0 %144
        %v146 = vsub.f32 %v141, %v145
        %v147 = vmul.f32 %v146, 1.442695
        %v148 = vpow.pop %v147
        %v149 = vsel %vm142, %v148, 0.0
        %150 = vadd.xlane.f32.xlu0 %v149
        %v151 = vpop.xlane.xlu0 %150
        %v152 = vrcp.pop %v151
        %v153 = vmul.f32 %v151, %v152
        %v154 = vsub.f32 1.0, %v153
        %v155 = vmul.f32 %v152, %v154
        %v156 = vadd.f32 %v152, %v155
        %vm157 = vweird.f32 %v151
        %vm158 = vweird.f32 %v152
        %vm159 = vmor %vm157, %vm158
        %v160 = vsel %vm159, %v152, %v156
        %v161 = vand.u32 2147483647, %v151
        %vm162 = vcmp.eq.f32.partialorder %v161, 8.507059e+37
        %v163 = vand.u32 %v151, 2147483648
        %v164 = vor.u32 1.1754944e-38, %v163
        %v165 = vsel %vm162, %v164, %v160
        %v166 = vmul.f32 %v148, %v165
        %v167 = vpack.c.bf16 %v166, %v166
        %168 = vrot.lane.b32.xlu0 %v117, 64
        %v169 = vpop.permute.xlu0 %168
        %v171 = vsel %vm142, %v167, 0
        %vm173 = vcmask 1043456
        %v175 = vsel %vm173, %v169, 0
        %177 = vmatpush.bf16.msra.mxu0 0
        %178 = vmatpush.bf16.msra.mxu0 0
        %179 = vmatpush.bf16.msra.mxu0 0
        %180 = vmatpush.bf16.msra.mxu0 0
        %181 = vmatpush.bf16.msra.mxu0 0
        %182 = vmatpush.bf16.msra.mxu0 0
        %183 = vmatpush.bf16.msra.mxu0 0
        %184 = vmatpush.bf16.msra.mxu0 %v175
        %185 = vmatmul.bf16.gmra.mxu0 %v171
        %v186 = vpop.f32.mrf.mxu0
        %v187 = vadd.f32 0.0, %v186
        %v188 = vpop.f32.mrf.mxu0
        %189 = vdwg.mxu0
        %v190 = vpack.c.bf16 %v187, %v187
        %vm191 = vcmask 125952
        %192 = vst.msk [vmem:[%s103] sm:$0xf] %vm191, %v190
        %193 = vrot.lane.b32.xlu0 %v117, 112
        %v194 = vpop.permute.xlu0 %193
        %195 = vrot.lane.b32.xlu0 %v117, 80
        %v196 = vpop.permute.xlu0 %195
        %v198 = vsel %vm120, %v194, 0
        %v201 = vsel %vm120, %v196, 0
        %203 = vmatpush.bf16.xpose.msra.mxu0 0
        %204 = vmatpush.bf16.xpose.msra.mxu0 0
        %205 = vmatpush.bf16.xpose.msra.mxu0 0
        %206 = vmatpush.bf16.xpose.msra.mxu0 0
        %207 = vmatpush.bf16.xpose.msra.mxu0 0
        %208 = vmatpush.bf16.xpose.msra.mxu0 0
        %209 = vmatpush.bf16.xpose.msra.mxu0 0
        %210 = vmatpush.bf16.xpose.msra.mxu0 %v201
        %211 = vmatmul.bf16.gmra.mxu0 %v198
        %v212 = vpop.f32.mrf.mxu0
        %v213 = vadd.f32 0.0, %v212
        %v214 = vpop.f32.mrf.mxu0
        %215 = vdwg.mxu0
        %v216 = vmul.f32 %v213, 0.25
        %v217 = vsel %vm114, %v216, -1e+30
        %v218 = vsel %vm142, %v217, -inf
        %219 = vmax.xlane.f32.xlu0 %v218
        %v220 = vpop.xlane.xlu0 %219
        %v221 = vsub.f32 %v217, %v220
        %v222 = vmul.f32 %v221, 1.442695
        %v223 = vpow.pop %v222
        %v224 = vsel %vm142, %v223, 0.0
        %225 = vadd.xlane.f32.xlu0 %v224
        %v226 = vpop.xlane.xlu0 %225
        %v227 = vrcp.pop %v226
        %v228 = vmul.f32 %v226, %v227
        %v229 = vsub.f32 1.0, %v228
        %v230 = vmul.f32 %v227, %v229
        %v231 = vadd.f32 %v227, %v230
        %vm232 = vweird.f32 %v226
        %vm233 = vweird.f32 %v227
        %vm234 = vmor %vm232, %vm233
        %v235 = vsel %vm234, %v227, %v231
        %v236 = vand.u32 2147483647, %v226
        %vm237 = vcmp.eq.f32.partialorder %v236, 8.507059e+37
        %v238 = vand.u32 %v226, 2147483648
        %v239 = vor.u32 1.1754944e-38, %v238
        %v240 = vsel %vm237, %v239, %v235
        %v241 = vmul.f32 %v223, %v240
        %v242 = vpack.c.bf16 %v241, %v241
        %243 = vrot.lane.b32.xlu0 %v117, 48
        %v244 = vpop.permute.xlu0 %243
        %v246 = vsel %vm142, %v242, 0
        %v249 = vsel %vm173, %v244, 0
        %251 = vmatpush.bf16.msra.mxu0 0
        %252 = vmatpush.bf16.msra.mxu0 0
        %253 = vmatpush.bf16.msra.mxu0 0
        %254 = vmatpush.bf16.msra.mxu0 0
        %255 = vmatpush.bf16.msra.mxu0 0
        %256 = vmatpush.bf16.msra.mxu0 0
        %257 = vmatpush.bf16.msra.mxu0 0
        %258 = vmatpush.bf16.msra.mxu0 %v249
        %259 = vmatmul.bf16.gmra.mxu0 %v246
        %v260 = vpop.f32.mrf.mxu0
        %v261 = vadd.f32 0.0, %v260
        %v262 = vpop.f32.mrf.mxu0
        %263 = vdwg.mxu0
        %v264 = vpack.c.bf16 %v261, %v261
        %s265 = scalar_lea.vmem %s103, 4 [#allocation2]
        %266 = vst.msk [vmem:[%s265] sm:$0xf] %vm191, %v264
        %s267 = sand.u32 %s46, 1
        %s268 = sand.u32 %s46, 1
        %s269 = smul.addr %s268, 8
        %s270 = scalar_lea.vmem [#allocation2], %s269
        // Predicated region
        $region25: #{gpt_forward.12} parent=23 // pred_check
          %p271 = pneg %p56
        $region26: #{gpt_forward.12} parent=23 // pred_check_branch
          %273 = sbr.rel (%p271) target = $region28
        $region27: #{gpt_forward.12} parent=23 // pred_region
          %s274 = smul.addr %s12, 4
          %s275 = scalar_lea.vmem %s1, %s274
          // Predicated region
          $region29: #{gpt_forward.12} parent=27 // pred_check
            _
          $region30: #{gpt_forward.12} parent=27 // pred_check_branch
            %277 = sbr.rel (0) target = $region32
          $region31: #{gpt_forward.12} parent=27 // pred_region
            // Predicated region
            $region33: #{gpt_forward.12} parent=31 // pred_check
              _
            $region34: #{gpt_forward.12} parent=31 // pred_check_branch
              %279 = sbr.rel target = $region36
            $region35: #{gpt_forward.12} parent=31 // pred_region
              // Predicated region
              $region48: #{gpt_forward.12} parent=35 // pred_check
                _
              $region49: #{gpt_forward.12} parent=35 // pred_check_branch
                %297 = sbr.rel (0) target = $region51
              $region50: #{gpt_forward.12} parent=35 // pred_region
                loop: start=0, step=1, limit=1
                $region52: #{gpt_forward.12} parent=50 // loop_pre_header
                  _
                $region53: #{gpt_forward.12} parent=50 // loop_header
                  %s299 = sphi 0, %s303
                  %p300 = scmp.ge.s32.totalorder %s299, 1
                  %s304 = sphi %s270, %s270
                  %s305 = sphi %s275, %s275
                $region54: #{gpt_forward.12} parent=50 // loop_header_branch
                  %302 = sbr.rel (%p300) target = $region58
                $region55: #{gpt_forward.12} parent=50 // loop_body
                  _
                $region56: #{gpt_forward.12} parent=50 // loop_footer
                  %s303 = sadd.s32 1, %s299
                $region57: #{gpt_forward.12} parent=50 // loop_footer_branch
                  %298 = sbr.rel target = $region53
                $region58: #{gpt_forward.12} parent=50 // loop_exit
                  _
                %s307 = ssub.s32 16, 1
                loop: start=0, step=1, limit=1
                $region59: #{gpt_forward.12} parent=50 // loop_pre_header
                  _
                $region60: #{gpt_forward.12} parent=50 // loop_header
                  %s309 = sphi 0, %s313
                  %p310 = scmp.ge.s32.totalorder %s309, 1
                  %s314 = sphi %s270, %s270
                  %s315 = sphi %s275, %s275
                $region61: #{gpt_forward.12} parent=50 // loop_header_branch
                  %312 = sbr.rel (%p310) target = $region65
                $region62: #{gpt_forward.12} parent=50 // loop_body
                  %v316 = vld [vmem:[%s314] sm:%s307]
                  %317 = vst [vmem:[%s315] sm:%s307] %v316
                  %v318 = vld [vmem:[%s314 + $0x4] sm:%s307]
                  %319 = vst [vmem:[%s315 + $0x8] sm:%s307] %v318
                $region63: #{gpt_forward.12} parent=50 // loop_footer
                  %s313 = sadd.s32 1, %s309
                $region64: #{gpt_forward.12} parent=50 // loop_footer_branch
                  %308 = sbr.rel target = $region60
                $region65: #{gpt_forward.12} parent=50 // loop_exit
                  _
              $region51: #{gpt_forward.12} parent=35 // pred_fallthru
                _
            $region36: #{gpt_forward.12} parent=31 // pred_fallthru
              _
            // Predicated region
            $region37: #{gpt_forward.12} parent=31 // pred_check
              _
            $region38: #{gpt_forward.12} parent=31 // pred_check_branch
              %281 = sbr.rel (0) target = $region40
            $region39: #{gpt_forward.12} parent=31 // pred_region
              %s283 = ssub.s32 16, 1
              loop: start=0, step=1, limit=1
              $region41: #{gpt_forward.12} parent=39 // loop_pre_header
                _
              $region42: #{gpt_forward.12} parent=39 // loop_header
                %s285 = sphi 0, %s289
                %p286 = scmp.ge.s32.totalorder %s285, 1
                %s290 = sphi %s270, %s270
                %s291 = sphi %s275, %s275
              $region43: #{gpt_forward.12} parent=39 // loop_header_branch
                %288 = sbr.rel (%p286) target = $region47
              $region44: #{gpt_forward.12} parent=39 // loop_body
                %v292 = vld [vmem:[%s290] sm:%s283]
                %293 = vst [vmem:[%s291] sm:%s283] %v292
                %v294 = vld [vmem:[%s290 + $0x4] sm:%s283]
                %295 = vst [vmem:[%s291 + $0x8] sm:%s283] %v294
              $region45: #{gpt_forward.12} parent=39 // loop_footer
                %s289 = sadd.s32 1, %s285
              $region46: #{gpt_forward.12} parent=39 // loop_footer_branch
                %284 = sbr.rel target = $region42
              $region47: #{gpt_forward.12} parent=39 // loop_exit
                _
            $region40: #{gpt_forward.12} parent=31 // pred_fallthru
              _
          $region32: #{gpt_forward.12} parent=27 // pred_fallthru
            _
          %320 = vnop
        $region28: #{gpt_forward.12} parent=23 // pred_fallthru
          _
      $region24: #{gpt_forward.12} parent=5 // pred_fallthru
        _
      %p321 = scmp.le.s32.totalorder 2, %s7
      // Predicated region
      $region66: #{gpt_forward.12} parent=5 // pred_check
        %p322 = pneg %p321
      $region67: #{gpt_forward.12} parent=5 // pred_check_branch
        %324 = sbr.rel (%p322) target = $region69
      $region68: #{gpt_forward.12} parent=5 // pred_region
        %s325 = ssub.s32 %s7, 2
        // Predicated region
        $region70: #{gpt_forward.12} parent=68 // pred_check
          %p326 = pneg %p62
        $region71: #{gpt_forward.12} parent=68 // pred_check_branch
          %328 = sbr.rel (%p326) target = $region73
        $region72: #{gpt_forward.12} parent=68 // pred_region
          %s329 = sand.u32 %s47, 1
          %s330 = sand.u32 %s47, 1
          %s331 = smul.addr %s330, 8
          %s332 = scalar_lea.vmem [#allocation2], %s331
        $region73: #{gpt_forward.12} parent=68 // pred_fallthru
          _
      $region69: #{gpt_forward.12} parent=5 // pred_fallthru
        _
    $region6: #{gpt_forward.12} parent=1 // loop_footer
      %s11 = sadd.s32 1, %s7
    $region7: #{gpt_forward.12} parent=1 // loop_footer_branch
      %6 = sbr.rel target = $region3
    $region8: #{gpt_forward.12} parent=1 // loop_exit
      _

// kernel: gpt_forward.14
$region0: #{gpt_forward.14}
  #allocation0 [shape = 'u32[]', space=smem, size = 0x4, offset = 0x4, fixed_abs, tag = 'smem constant byte address 0x4 - core index']
  #allocation1 [shape = 'u32[72,128]{1,0:T(1,128)}', space=vmem, size = 0x9000, scoped, tag = 'internal scratch']
  #allocation2 [shape = 'bf16[16,32]{1,0:T(8,128)(2,1)}', space=vmem, size = 0x1000, scoped, tag = 'scratch operand']
  %s0 = inlined_call_operand.vmem [shape: f32[16,32], index: 0, kind: input, shape index: {}]
  %s1 = inlined_call_operand.vmem [shape: f32[1,32], index: 1, kind: input, shape index: {}]
  %s2 = inlined_call_operand.vmem [shape: f32[1,32], index: 2, kind: input, shape index: {}]
  %s3 = inlined_call_operand.vmem [shape: bf16[32,128], index: 3, kind: input, shape index: {}]
  %s4 = inlined_call_operand.vmem [shape: f32[1,128], index: 4, kind: input, shape index: {}]
  %s5 = inlined_call_operand.vmem [shape: bf16[16,128], index: 5, kind: output, shape index: {}]
  %s6 = sld [smem:[#allocation0]]
  $region34: #{gpt_forward.14} parent=0
    _
  %s8 = ssub.s32 1, %s6
  %s9 = scalar_select 0, %s8, %s6
  // Predicated region
  $region2: #{gpt_forward.14} parent=0 // pred_check
    _
  $region3: #{gpt_forward.14} parent=0 // pred_check_branch
    %11 = sbr.rel (0) target = $region5
  $region4: #{gpt_forward.14} parent=0 // pred_region
    _
  $region5: #{gpt_forward.14} parent=0 // pred_fallthru
    _
  // Predicated region
  $region6: #{gpt_forward.14} parent=0 // pred_check
    _
  $region7: #{gpt_forward.14} parent=0 // pred_check_branch
    %13 = sbr.rel (0) target = $region9
  $region8: #{gpt_forward.14} parent=0 // pred_region
    _
  $region9: #{gpt_forward.14} parent=0 // pred_fallthru
    _
  // Predicated region
  $region10: #{gpt_forward.14} parent=0 // pred_check
    _
  $region11: #{gpt_forward.14} parent=0 // pred_check_branch
    %15 = sbr.rel (0) target = $region13
  $region12: #{gpt_forward.14} parent=0 // pred_region
    _
  $region13: #{gpt_forward.14} parent=0 // pred_fallthru
    _
  // Predicated region
  $region14: #{gpt_forward.14} parent=0 // pred_check
    _
  $region15: #{gpt_forward.14} parent=0 // pred_check_branch
    %17 = sbr.rel (0) target = $region17
  $region16: #{gpt_forward.14} parent=0 // pred_region
    _
  $region17: #{gpt_forward.14} parent=0 // pred_fallthru
    _
  // Predicated region
  $region18: #{gpt_forward.14} parent=0 // pred_check
    _
  $region19: #{gpt_forward.14} parent=0 // pred_check_branch
    %19 = sbr.rel (0) target = $region21
  $region20: #{gpt_forward.14} parent=0 // pred_region
    _
  $region21: #{gpt_forward.14} parent=0 // pred_fallthru
    _
  %p21 = scmp.eq.s32.totalorder 0, 0
  // Predicated region
  $region22: #{gpt_forward.14} parent=0 // pred_check
    %p22 = pneg %p21
  $region23: #{gpt_forward.14} parent=0 // pred_check_branch
    %24 = sbr.rel (%p22) target = $region25
  $region24: #{gpt_forward.14} parent=0 // pred_region
    %v25 = vld [vmem:[%s0] sm:$0xff]
    %v26 = vld [vmem:[%s0 + $0x8] sm:$0xff]
    %vm27 = vcmask 261120
    %v28 = vsel %vm27, %v25, 0.0
    %29 = vadd.xlane.f32.xlu0 %v28
    %v30 = vpop.xlane.xlu0 %29
    %v31 = vsel %vm27, %v26, 0.0
    %32 = vadd.xlane.f32.xlu0 %v31
    %v33 = vpop.xlane.xlu0 %32
    %v34 = vrcp.pop 32.0
    %v35 = vmul.f32 32.0, %v34
    %v36 = vsub.f32 1.0, %v35
    %v37 = vmul.f32 %v34, %v36
    %v38 = vadd.f32 %v34, %v37
    %vm39 = vweird.f32 %v34
    %v40 = vsel %vm39, %v34, %v38
    %v41 = vmul.f32 %v30, %v40
    %v42 = vmul.f32 %v33, %v40
    %v43 = vsub.f32 %v25, %v41
    %v44 = vsub.f32 %v26, %v42
    %v45 = vmul.f32 %v43, %v43
    %v46 = vmul.f32 %v44, %v44
    %v47 = vsel %vm27, %v45, 0.0
    %48 = vadd.xlane.f32.xlu0 %v47
    %v49 = vpop.xlane.xlu0 %48
    %v50 = vsel %vm27, %v46, 0.0
    %51 = vadd.xlane.f32.xlu0 %v50
    %v52 = vpop.xlane.xlu0 %51
    %v53 = vmul.f32 %v49, %v40
    %v54 = vmul.f32 %v52, %v40
    %v55 = vadd.f32 %v53, 1e-05
    %v56 = vadd.f32 %v54, 1e-05
    %v57 = vrsqrt.pop %v55
    %v58 = vmul.f32 %v57, %v55
    %v59 = vmul.f32 %v58, %v57
    %v60 = vmul.f32 0.5, %v59
    %v61 = vsub.f32 1.5, %v60
    %v62 = vmul.f32 %v57, %v61
    %vm63 = vweird.f32 %v55
    %vm64 = vweird.f32 %v57
    %vm65 = vmor %vm63, %vm64
    %v66 = vsel %vm65, %v57, %v62
    %v67 = vrsqrt.pop %v56
    %v68 = vmul.f32 %v67, %v56
    %v69 = vmul.f32 %v68, %v67
    %v70 = vmul.f32 0.5, %v69
    %v71 = vsub.f32 1.5, %v70
    %v72 = vmul.f32 %v67, %v71
    %vm73 = vweird.f32 %v56
    %vm74 = vweird.f32 %v67
    %vm75 = vmor %vm73, %vm74
    %v76 = vsel %vm75, %v67, %v72
    %v77 = vmul.f32 %v43, %v66
    %v78 = vmul.f32 %v44, %v76
    %v79 = vld [vmem:[%s1] sm:$0x1]
    %v81 = vperm.slane %v79, 0
    %v83 = vmul.f32 %v77, %v81
    %v84 = vmul.f32 %v78, %v81
    %v85 = vld [vmem:[%s2] sm:$0x1]
    %v87 = vperm.slane %v85, 0
    %v89 = vadd.f32 %v83, %v87
    %v90 = vadd.f32 %v84, %v87
    %v91 = vpack.c.bf16 %v89, %v89
    %v92 = vpack.c.bf16 %v90, %v90
    %vm93 = vcmask 257024
    %94 = vst.msk [vmem:[#allocation2] sm:$0xf] %vm93, %v91
    %95 = vst.msk [vmem:[#allocation2 + $0x4] sm:$0xf] %vm93, %v92
  $region25: #{gpt_forward.14} parent=0 // pred_fallthru
    _
  %v96 = vld [vmem:[#allocation2] sm:$0xf]
  %v97 = vld [vmem:[#allocation2 + $0x4] sm:$0xf]
  %v98 = vld [vmem:[%s3] sm:$0xf]
  %v99 = vld [vmem:[%s3 + $0x4] sm:$0xf]
  %v100 = vld [vmem:[%s3 + $0x8] sm:$0xf]
  %v101 = vld [vmem:[%s3 + $0xc] sm:$0xf]
  %v102 = vld [vmem:[%s4] sm:$0x1]
  %v104 = vperm.slane %v102, 0
  %v108 = vunpack.c.l.b16 %v96
  %v109 = vunpack.c.l.b16 %v97
  %v110 = vpack.c.b16 %v109, %v108
  %v115 = vunpack.c.l.b16 %v98
  %v116 = vunpack.c.l.b16 %v99
  %v117 = vunpack.c.l.b16 %v100
  %v118 = vunpack.c.l.b16 %v101
  %v119 = vpack.c.b16 %v116, %v115
  %v120 = vpack.c.b16 %v118, %v117
  %vm123 = vcmask 261120
  %v125 = vsel %vm123, %v110, 0
  %127 = vmatpush.bf16.msra.mxu0 0
  %128 = vmatpush.bf16.msra.mxu0 0
  %129 = vmatpush.bf16.msra.mxu0 0
  %130 = vmatpush.bf16.msra.mxu0 0
  %131 = vmatpush.bf16.msra.mxu0 0
  %132 = vmatpush.bf16.msra.mxu0 0
  %133 = vmatpush.bf16.msra.mxu0 %v120
  %134 = vmatpush.bf16.msra.mxu0 %v119
  %135 = vmatmul.bf16.gmra.mxu0 %v125
  %v136 = vpop.f32.mrf.mxu0
  %v137 = vadd.f32 %v104, %v136
  %v138 = vpop.f32.mrf.mxu0
  %v139 = vadd.f32 %v104, %v138
  %140 = vdwg.mxu0
  %v141 = vmul.f32 %v137, 0.5
  %v142 = vmul.f32 %v139, 0.5
  %v143 = vmul.f32 %v137, 0.044715
  %v144 = vmul.f32 %v139, 0.044715
  %v145 = vmul.f32 %v143, %v137
  %v146 = vmul.f32 %v144, %v139
  %v147 = vmul.f32 %v145, %v137
  %v148 = vmul.f32 %v146, %v139
  %v149 = vadd.f32 %v137, %v147
  %v150 = vadd.f32 %v139, %v148
  %v151 = vmul.f32 %v149, 0.7978846
  %v152 = vmul.f32 %v150, 0.7978846
  %v153 = vtanh.pop %v151
  %v154 = vtanh.pop %v152
  %v155 = vadd.f32 %v153, 1.0
  %v156 = vadd.f32 %v154, 1.0
  %v157 = vmul.f32 %v141, %v155
  %v158 = vmul.f32 %v142, %v156
  %v159 = vpack.c.bf16 %v157, %v157
  %v160 = vpack.c.bf16 %v158, %v158
  %161 = vst [vmem:[%s5] sm:$0xf] %v159
  %162 = vst [vmem:[%s5 + $0x4] sm:$0xf] %v160
  // Predicated region
  $region26: #{gpt_forward.14} parent=0 // pred_check
    _
  $region27: #{gpt_forward.14} parent=0 // pred_check_branch
    %164 = sbr.rel (0) target = $region29
  $region28: #{gpt_forward.14} parent=0 // pred_region
    _
  $region29: #{gpt_forward.14} parent=0 // pred_fallthru
    _
  // Predicated region
  $region30: #{gpt_forward.14} parent=0 // pred_check
    _
  $region31: #{gpt_forward.14} parent=0 // pred_check_branch
    %166 = sbr.rel (0) target = $region33
  $region32: #{gpt_forward.14} parent=0 // pred_region
    _
  $region33: #{gpt_forward.14} parent=0 // pred_fallthru
    _

// kernel: gpt_forward.15
$region0: #{gpt_forward.15}
  #allocation0 [shape = 'u32[]', space=smem, size = 0x4, offset = 0x4, fixed_abs, tag = 'smem constant byte address 0x4 - core index']
  #allocation1 [shape = 'u32[72,128]{1,0:T(1,128)}', space=vmem, size = 0x9000, scoped, tag = 'internal scratch']
  #allocation2 [shape = 'f32[16,32]{1,0:T(8,128)}', space=vmem, size = 0x2000, scoped, tag = 'scratch operand']
  %s0 = inlined_call_operand.vmem [shape: bf16[16,128], index: 0, kind: input, shape index: {}]
  %s1 = inlined_call_operand.vmem [shape: bf16[128,32], index: 1, kind: input, shape index: {}]
  %s2 = inlined_call_operand.vmem [shape: f32[1,32], index: 2, kind: input, shape index: {}]
  %s3 = inlined_call_operand.vmem [shape: f32[16,32], index: 3, kind: input, shape index: {}]
  %s4 = inlined_call_operand.vmem [shape: f32[16,32], index: 4, kind: output, shape index: {}]
  %s5 = sld [smem:[#allocation0]]
  $region34: #{gpt_forward.15} parent=0
    _
  %s7 = ssub.s32 1, %s5
  %s8 = scalar_select 0, %s7, %s5
  // Predicated region
  $region2: #{gpt_forward.15} parent=0 // pred_check
    _
  $region3: #{gpt_forward.15} parent=0 // pred_check_branch
    %10 = sbr.rel (0) target = $region5
  $region4: #{gpt_forward.15} parent=0 // pred_region
    _
  $region5: #{gpt_forward.15} parent=0 // pred_fallthru
    _
  // Predicated region
  $region6: #{gpt_forward.15} parent=0 // pred_check
    _
  $region7: #{gpt_forward.15} parent=0 // pred_check_branch
    %12 = sbr.rel (0) target = $region9
  $region8: #{gpt_forward.15} parent=0 // pred_region
    _
  $region9: #{gpt_forward.15} parent=0 // pred_fallthru
    _
  // Predicated region
  $region10: #{gpt_forward.15} parent=0 // pred_check
    _
  $region11: #{gpt_forward.15} parent=0 // pred_check_branch
    %14 = sbr.rel (0) target = $region13
  $region12: #{gpt_forward.15} parent=0 // pred_region
    _
  $region13: #{gpt_forward.15} parent=0 // pred_fallthru
    _
  // Predicated region
  $region14: #{gpt_forward.15} parent=0 // pred_check
    _
  $region15: #{gpt_forward.15} parent=0 // pred_check_branch
    %16 = sbr.rel (0) target = $region17
  $region16: #{gpt_forward.15} parent=0 // pred_region
    _
  $region17: #{gpt_forward.15} parent=0 // pred_fallthru
    _
  %p17 = scmp.eq.s32.totalorder 0, 0
  // Predicated region
  $region18: #{gpt_forward.15} parent=0 // pred_check
    %p18 = pneg %p17
  $region19: #{gpt_forward.15} parent=0 // pred_check_branch
    %20 = sbr.rel (%p18) target = $region21
  $region20: #{gpt_forward.15} parent=0 // pred_region
    %vm21 = vcmask 261120
    %22 = vst.msk [vmem:[#allocation2] sm:$0xff] %vm21, 0.0
    %23 = vst.msk [vmem:[#allocation2 + $0x8] sm:$0xff] %vm21, 0.0
  $region21: #{gpt_forward.15} parent=0 // pred_fallthru
    _
  %v24 = vld [vmem:[#allocation2] sm:$0xff]
  %v25 = vld [vmem:[#allocation2 + $0x8] sm:$0xff]
  %v26 = vld [vmem:[%s0] sm:$0xf]
  %v27 = vld [vmem:[%s0 + $0x4] sm:$0xf]
  %v28 = vld [vmem:[%s1] sm:$0xf]
  %v29 = vld [vmem:[%s1 + $0x4] sm:$0xf]
  %v30 = vld [vmem:[%s1 + $0x8] sm:$0xf]
  %v31 = vld [vmem:[%s1 + $0xc] sm:$0xf]
  %v32 = vld [vmem:[%s1 + $0x10] sm:$0xf]
  %v33 = vld [vmem:[%s1 + $0x14] sm:$0xf]
  %v34 = vld [vmem:[%s1 + $0x18] sm:$0xf]
  %v35 = vld [vmem:[%s1 + $0x1c] sm:$0xf]
  %v36 = vld [vmem:[%s1 + $0x20] sm:$0xf]
  %v37 = vld [vmem:[%s1 + $0x24] sm:$0xf]
  %v38 = vld [vmem:[%s1 + $0x28] sm:$0xf]
  %v39 = vld [vmem:[%s1 + $0x2c] sm:$0xf]
  %v40 = vld [vmem:[%s1 + $0x30] sm:$0xf]
  %v41 = vld [vmem:[%s1 + $0x34] sm:$0xf]
  %v42 = vld [vmem:[%s1 + $0x38] sm:$0xf]
  %v43 = vld [vmem:[%s1 + $0x3c] sm:$0xf]
  %v46 = vunpack.c.l.b16 %v26
  %v47 = vunpack.c.l.b16 %v27
  %v48 = vpack.c.b16 %v47, %v46
  %v66 = vunpack.c.l.b16 %v28
  %v67 = vunpack.c.l.b16 %v29
  %v68 = vunpack.c.l.b16 %v30
  %v69 = vunpack.c.l.b16 %v31
  %v70 = vunpack.c.l.b16 %v32
  %v71 = vunpack.c.l.b16 %v33
  %v72 = vunpack.c.l.b16 %v34
  %v73 = vunpack.c.l.b16 %v35
  %v74 = vunpack.c.l.b16 %v36
  %v75 = vunpack.c.l.b16 %v37
  %v76 = vunpack.c.l.b16 %v38
  %v77 = vunpack.c.l.b16 %v39
  %v78 = vunpack.c.l.b16 %v40
  %v79 = vunpack.c.l.b16 %v41
  %v80 = vunpack.c.l.b16 %v42
  %v81 = vunpack.c.l.b16 %v43
  %v82 = vpack.c.b16 %v67, %v66
  %v83 = vpack.c.b16 %v69, %v68
  %v84 = vpack.c.b16 %v71, %v70
  %v85 = vpack.c.b16 %v73, %v72
  %v86 = vpack.c.b16 %v75, %v74
  %v87 = vpack.c.b16 %v77, %v76
  %v88 = vpack.c.b16 %v79, %v78
  %v89 = vpack.c.b16 %v81, %v80
  %98 = vmatpush.bf16.msra.mxu0 %v89
  %99 = vmatpush.bf16.msra.mxu0 %v88
  %100 = vmatpush.bf16.msra.mxu0 %v87
  %101 = vmatpush.bf16.msra.mxu0 %v86
  %102 = vmatpush.bf16.msra.mxu0 %v85
  %103 = vmatpush.bf16.msra.mxu0 %v84
  %104 = vmatpush.bf16.msra.mxu0 %v83
  %105 = vmatpush.bf16.msra.mxu0 %v82
  %106 = vmatmul.bf16.gmra.mxu0 %v48
  %v107 = vpop.f32.mrf.mxu0
  %v108 = vadd.f32 0.0, %v107
  %v109 = vpop.f32.mrf.mxu0
  %v110 = vadd.f32 0.0, %v109
  %111 = vdwg.mxu0
  %v112 = vadd.f32 %v24, %v108
  %v113 = vadd.f32 %v25, %v110
  %vm114 = vcmask 261120
  %115 = vst.msk [vmem:[#allocation2] sm:$0xff] %vm114, %v112
  %116 = vst.msk [vmem:[#allocation2 + $0x8] sm:$0xff] %vm114, %v113
  // Predicated region
  $region22: #{gpt_forward.15} parent=0 // pred_check
    %p117 = pneg %p17
  $region23: #{gpt_forward.15} parent=0 // pred_check_branch
    %119 = sbr.rel (%p117) target = $region25
  $region24: #{gpt_forward.15} parent=0 // pred_region
    %v120 = vld [vmem:[#allocation2] sm:$0xff]
    %v121 = vld [vmem:[#allocation2 + $0x8] sm:$0xff]
    %v122 = vld [vmem:[%s2] sm:$0x1]
    %v124 = vperm.slane %v122, 0
    %v126 = vadd.f32 %v120, %v124
    %v127 = vadd.f32 %v121, %v124
    %v128 = vld [vmem:[%s3] sm:$0xff]
    %v129 = vld [vmem:[%s3 + $0x8] sm:$0xff]
    %v130 = vadd.f32 %v126, %v128
    %v131 = vadd.f32 %v127, %v129
    %132 = vst.msk [vmem:[%s4] sm:$0xff] %vm114, %v130
    %133 = vst.msk [vmem:[%s4 + $0x8] sm:$0xff] %vm114, %v131
  $region25: #{gpt_forward.15} parent=0 // pred_fallthru
    _
  // Predicated region
  $region26: #{gpt_forward.15} parent=0 // pred_check
    _
  $region27: #{gpt_forward.15} parent=0 // pred_check_branch
    %135 = sbr.rel (0) target = $region29
  $region28: #{gpt_forward.15} parent=0 // pred_region
    _
  $region29: #{gpt_forward.15} parent=0 // pred_fallthru
    _
  // Predicated region
  $region30: #{gpt_forward.15} parent=0 // pred_check
    _
  $region31: #{gpt_forward.15} parent=0 // pred_check_branch
    %137 = sbr.rel (0) target = $region33
  $region32: #{gpt_forward.15} parent=0 // pred_region
    _
  $region33: #{gpt_forward.15} parent=0 // pred_fallthru
    _

// kernel: gpt_forward.21
$region0: #{gpt_forward.21}
  #allocation0 [shape = 'u32[]', space=smem, size = 0x4, offset = 0x4, fixed_abs, tag = 'smem constant byte address 0x4 - core index']
  #allocation1 [shape = 'u32[72,128]{1,0:T(1,128)}', space=vmem, size = 0x9000, scoped, tag = 'internal scratch']
  #allocation2 [shape = 'bf16[16,32]{1,0:T(8,128)(2,1)}', space=vmem, size = 0x1000, scoped, tag = 'scratch operand']
  #allocation3 [shape = 'f32[16,1]{1,0:T(8,128)}', space=vmem, size = 0x2000, scoped, tag = 'scratch operand']
  #allocation4 [shape = 'f32[16,1]{1,0:T(8,128)}', space=vmem, size = 0x2000, scoped, tag = 'scratch operand']
  #allocation5 [shape = 'f32[16,1]{1,0:T(8,128)}', space=vmem, size = 0x2000, scoped, tag = 'scratch operand']
  %s0 = inlined_call_operand.vmem [shape: f32[16,32], index: 0, kind: input, shape index: {}]
  %s1 = inlined_call_operand.vmem [shape: f32[1,32], index: 1, kind: input, shape index: {}]
  %s2 = inlined_call_operand.vmem [shape: f32[1,32], index: 2, kind: input, shape index: {}]
  %s3 = inlined_call_operand.vmem [shape: bf16[32,64], index: 3, kind: input, shape index: {}]
  %s4 = inlined_call_operand.vmem [shape: s32[16,1], index: 4, kind: input, shape index: {}]
  %s5 = inlined_call_operand.hbm [shape: f32[16,64], index: 5, kind: output, shape index: {0}]
  %s6 = inlined_call_operand.vmem [shape: f32[16,1], index: 6, kind: output, shape index: {1}]
  %s7 = inlined_call_operand.vmem [shape: f32[16,1], index: 7, kind: output, shape index: {2}]
  %8 = xla_tuple %s5, %s6, %s7
  %s9 = sld [smem:[#allocation0]]
  $region54: #{gpt_forward.21} parent=0
    _
  %s11 = ssub.s32 1, %s9
  %s12 = scalar_select 0, %s11, %s9
  $region1: #{gpt_forward.21} parent=0
    #allocation6 [shape = 'u8[8192]{0}', space=vmem, size = 0x2000, scoped, tag = 'output window, operand 0, single buffered']
    #allocation7 [shape = 's32[1]{0}', space=sflag, size = 0x4, scoped, tag = 'scoped memory for gpt_forward.21']
    %13 = vsyncpa [#allocation7], 0
    // Predicated region
    $region2: #{gpt_forward.21} parent=1 // pred_check
      _
    $region3: #{gpt_forward.21} parent=1 // pred_check_branch
      %15 = sbr.rel (0) target = $region5
    $region4: #{gpt_forward.21} parent=1 // pred_region
      _
    $region5: #{gpt_forward.21} parent=1 // pred_fallthru
      _
    // Predicated region
    $region6: #{gpt_forward.21} parent=1 // pred_check
      _
    $region7: #{gpt_forward.21} parent=1 // pred_check_branch
      %17 = sbr.rel (0) target = $region9
    $region8: #{gpt_forward.21} parent=1 // pred_region
      _
    $region9: #{gpt_forward.21} parent=1 // pred_fallthru
      _
    // Predicated region
    $region10: #{gpt_forward.21} parent=1 // pred_check
      _
    $region11: #{gpt_forward.21} parent=1 // pred_check_branch
      %19 = sbr.rel (0) target = $region13
    $region12: #{gpt_forward.21} parent=1 // pred_region
      _
    $region13: #{gpt_forward.21} parent=1 // pred_fallthru
      _
    // Predicated region
    $region14: #{gpt_forward.21} parent=1 // pred_check
      _
    $region15: #{gpt_forward.21} parent=1 // pred_check_branch
      %21 = sbr.rel (0) target = $region17
    $region16: #{gpt_forward.21} parent=1 // pred_region
      _
    $region17: #{gpt_forward.21} parent=1 // pred_fallthru
      _
    // Predicated region
    $region18: #{gpt_forward.21} parent=1 // pred_check
      _
    $region19: #{gpt_forward.21} parent=1 // pred_check_branch
      %23 = sbr.rel (0) target = $region21
    $region20: #{gpt_forward.21} parent=1 // pred_region
      _
    $region21: #{gpt_forward.21} parent=1 // pred_fallthru
      _
    %p25 = scmp.eq.s32.totalorder 0, 0
    // Predicated region
    $region22: #{gpt_forward.21} parent=1 // pred_check
      %p26 = pneg %p25
    $region23: #{gpt_forward.21} parent=1 // pred_check_branch
      %28 = sbr.rel (%p26) target = $region25
    $region24: #{gpt_forward.21} parent=1 // pred_region
      %v29 = vld [vmem:[%s0] sm:$0xff]
      %v30 = vld [vmem:[%s0 + $0x8] sm:$0xff]
      %vm31 = vcmask 261120
      %v32 = vsel %vm31, %v29, 0.0
      %33 = vadd.xlane.f32.xlu0 %v32
      %v34 = vpop.xlane.xlu0 %33
      %v35 = vsel %vm31, %v30, 0.0
      %36 = vadd.xlane.f32.xlu0 %v35
      %v37 = vpop.xlane.xlu0 %36
      %v38 = vrcp.pop 32.0
      %v39 = vmul.f32 32.0, %v38
      %v40 = vsub.f32 1.0, %v39
      %v41 = vmul.f32 %v38, %v40
      %v42 = vadd.f32 %v38, %v41
      %vm43 = vweird.f32 %v38
      %v44 = vsel %vm43, %v38, %v42
      %v45 = vmul.f32 %v34, %v44
      %v46 = vmul.f32 %v37, %v44
      %v47 = vsub.f32 %v29, %v45
      %v48 = vsub.f32 %v30, %v46
      %v49 = vmul.f32 %v47, %v47
      %v50 = vmul.f32 %v48, %v48
      %v51 = vsel %vm31, %v49, 0.0
      %52 = vadd.xlane.f32.xlu0 %v51
      %v53 = vpop.xlane.xlu0 %52
      %v54 = vsel %vm31, %v50, 0.0
      %55 = vadd.xlane.f32.xlu0 %v54
      %v56 = vpop.xlane.xlu0 %55
      %v57 = vmul.f32 %v53, %v44
      %v58 = vmul.f32 %v56, %v44
      %v59 = vadd.f32 %v57, 1e-05
      %v60 = vadd.f32 %v58, 1e-05
      %v61 = vrsqrt.pop %v59
      %v62 = vmul.f32 %v61, %v59
      %v63 = vmul.f32 %v62, %v61
      %v64 = vmul.f32 0.5, %v63
      %v65 = vsub.f32 1.5, %v64
      %v66 = vmul.f32 %v61, %v65
      %vm67 = vweird.f32 %v59
      %vm68 = vweird.f32 %v61
      %vm69 = vmor %vm67, %vm68
      %v70 = vsel %vm69, %v61, %v66
      %v71 = vrsqrt.pop %v60
      %v72 = vmul.f32 %v71, %v60
      %v73 = vmul.f32 %v72, %v71
      %v74 = vmul.f32 0.5, %v73
      %v75 = vsub.f32 1.5, %v74
      %v76 = vmul.f32 %v71, %v75
      %vm77 = vweird.f32 %v60
      %vm78 = vweird.f32 %v71
      %vm79 = vmor %vm77, %vm78
      %v80 = vsel %vm79, %v71, %v76
      %v81 = vmul.f32 %v47, %v70
      %v82 = vmul.f32 %v48, %v80
      %v83 = vld [vmem:[%s1] sm:$0x1]
      %v85 = vperm.slane %v83, 0
      %v87 = vmul.f32 %v81, %v85
      %v88 = vmul.f32 %v82, %v85
      %v89 = vld [vmem:[%s2] sm:$0x1]
      %v91 = vperm.slane %v89, 0
      %v93 = vadd.f32 %v87, %v91
      %v94 = vadd.f32 %v88, %v91
      %v95 = vpack.c.bf16 %v93, %v93
      %v96 = vpack.c.bf16 %v94, %v94
      %vm97 = vcmask 257024
      %98 = vst.msk [vmem:[#allocation2] sm:$0xf] %vm97, %v95
      %99 = vst.msk [vmem:[#allocation2 + $0x4] sm:$0xf] %vm97, %v96
      %vm100 = vcmask 7168
      %101 = vst.msk [vmem:[#allocation3] sm:$0xff] %vm100, -inf
      %102 = vst.msk [vmem:[#allocation3 + $0x8] sm:$0xff] %vm100, -inf
      %103 = vst.msk [vmem:[#allocation4] sm:$0xff] %vm100, 0.0
      %104 = vst.msk [vmem:[#allocation4 + $0x8] sm:$0xff] %vm100, 0.0
      %105 = vst.msk [vmem:[#allocation5] sm:$0xff] %vm100, 0.0
      %106 = vst.msk [vmem:[#allocation5 + $0x8] sm:$0xff] %vm100, 0.0
    $region25: #{gpt_forward.21} parent=1 // pred_fallthru
      _
    %v107 = vld [vmem:[#allocation2] sm:$0xf]
    %v108 = vld [vmem:[#allocation2 + $0x4] sm:$0xf]
    %v109 = vld [vmem:[%s3] sm:$0xf]
    %v110 = vld [vmem:[%s3 + $0x4] sm:$0xf]
    %v111 = vld [vmem:[%s3 + $0x8] sm:$0xf]
    %v112 = vld [vmem:[%s3 + $0xc] sm:$0xf]
    %v115 = vunpack.c.l.b16 %v107
    %v116 = vunpack.c.l.b16 %v108
    %v117 = vpack.c.b16 %v116, %v115
    %v122 = vunpack.c.l.b16 %v109
    %v123 = vunpack.c.l.b16 %v110
    %v124 = vunpack.c.l.b16 %v111
    %v125 = vunpack.c.l.b16 %v112
    %v126 = vpack.c.b16 %v123, %v122
    %v127 = vpack.c.b16 %v125, %v124
    %vm130 = vcmask 261120
    %v132 = vsel %vm130, %v117, 0
    %134 = vmatpush.bf16.msra.mxu0 0
    %135 = vmatpush.bf16.msra.mxu0 0
    %136 = vmatpush.bf16.msra.mxu0 0
    %137 = vmatpush.bf16.msra.mxu0 0
    %138 = vmatpush.bf16.msra.mxu0 0
    %139 = vmatpush.bf16.msra.mxu0 0
    %140 = vmatpush.bf16.msra.mxu0 %v127
    %141 = vmatpush.bf16.msra.mxu0 %v126
    %142 = vmatmul.bf16.gmra.mxu0 %v132
    %v143 = vpop.f32.mrf.mxu0
    %v144 = vadd.f32 0.0, %v143
    %v145 = vpop.f32.mrf.mxu0
    %v146 = vadd.f32 0.0, %v145
    %147 = vdwg.mxu0
    %vm148 = vcmask 523264
    %149 = vst.msk [vmem:[#allocation6] sm:$0xff] %vm148, %v144
    %150 = vst.msk [vmem:[#allocation6 + $0x8] sm:$0xff] %vm148, %v146
    %v151 = vld [vmem:[%s4] sm:$0xff]
    %v152 = vld [vmem:[%s4 + $0x8] sm:$0xff]
    %v153 = vlaneseq
    %v154 = vand.u32 %v153, 127
    %s155 = smul.u32 0, 64
    %v156 = vstv %s155
    %v157 = vadd.s32 %v154, %v156
    %v158 = vld [vmem:[#allocation3] sm:$0xff]
    %v159 = vld [vmem:[#allocation3 + $0x8] sm:$0xff]
    %v160 = vsel %vm148, %v144, -inf
    %161 = vmax.xlane.f32.xlu0 %v160
    %v162 = vpop.xlane.xlu0 %161
    %v163 = vsel %vm148, %v146, -inf
    %164 = vmax.xlane.f32.xlu0 %v163
    %v165 = vpop.xlane.xlu0 %164
    %v166 = vmax.f32 %v158, %v162
    %v167 = vmax.f32 %v159, %v165
    %v168 = vsub.f32 %v158, %v166
    %v169 = vsub.f32 %v159, %v167
    %v170 = vmul.f32 %v168, 1.442695
    %v171 = vpow.pop %v170
    %v172 = vmul.f32 %v169, 1.442695
    %v173 = vpow.pop %v172
    %v174 = vld [vmem:[#allocation4] sm:$0xff]
    %v175 = vld [vmem:[#allocation4 + $0x8] sm:$0xff]
    %v176 = vmul.f32 %v171, %v174
    %v177 = vmul.f32 %v173, %v175
    %179 = vset.pattern.permute.xlu0 0
    %180 = vperm.xlu0 %179, %v166
    %v181 = vpop.permute.xlu0 %180
    %184 = vset.pattern.permute.xlu0 0
    %185 = vperm.xlu0 %184, %v167
    %v186 = vpop.permute.xlu0 %185
    %v188 = vsub.f32 %v144, %v181
    %v189 = vsub.f32 %v146, %v186
    %v190 = vmul.f32 %v188, 1.442695
    %v191 = vpow.pop %v190
    %v192 = vmul.f32 %v189, 1.442695
    %v193 = vpow.pop %v192
    %v194 = vsel %vm148, %v191, 0.0
    %195 = vadd.xlane.f32.xlu0 %v194
    %v196 = vpop.xlane.xlu0 %195
    %v197 = vsel %vm148, %v193, 0.0
    %198 = vadd.xlane.f32.xlu0 %v197
    %v199 = vpop.xlane.xlu0 %198
    %v200 = vadd.f32 %v176, %v196
    %v201 = vadd.f32 %v177, %v199
    %vm202 = vcmask 7168
    %203 = vst.msk [vmem:[#allocation4] sm:$0xff] %vm202, %v200
    %204 = vst.msk [vmem:[#allocation4 + $0x8] sm:$0xff] %vm202, %v201
    %205 = vst.msk [vmem:[#allocation3] sm:$0xff] %vm202, %v166
    %206 = vst.msk [vmem:[#allocation3 + $0x8] sm:$0xff] %vm202, %v167
    %v207 = vld [vmem:[#allocation5] sm:$0xff]
    %v208 = vld [vmem:[#allocation5 + $0x8] sm:$0xff]
    %209 = vset.pattern.permute.xlu0 0
    %210 = vperm.xlu0 %209, %v151
    %v211 = vpop.permute.xlu0 %210
    %212 = vset.pattern.permute.xlu0 0
    %213 = vperm.xlu0 %212, %v152
    %v214 = vpop.permute.xlu0 %213
    %vm215 = vcmp.eq.s32.totalorder %v157, %v211
    %vm216 = vcmp.eq.s32.totalorder %v157, %v214
    %v217 = vsel %vm215, %v144, 0.0
    %v218 = vsel %vm216, %v146, 0.0
    %v219 = vsel %vm148, %v217, 0.0
    %220 = vadd.xlane.f32.xlu0 %v219
    %v221 = vpop.xlane.xlu0 %220
    %v222 = vsel %vm148, %v218, 0.0
    %223 = vadd.xlane.f32.xlu0 %v222
    %v224 = vpop.xlane.xlu0 %223
    %v225 = vadd.f32 %v207, %v221
    %v226 = vadd.f32 %v208, %v224
    %227 = vst.msk [vmem:[#allocation5] sm:$0xff] %vm202, %v225
    %228 = vst.msk [vmem:[#allocation5 + $0x8] sm:$0xff] %vm202, %v226
    // Predicated region
    $region26: #{gpt_forward.21} parent=1 // pred_check
      %p229 = pneg %p25
    $region27: #{gpt_forward.21} parent=1 // pred_check_branch
      %231 = sbr.rel (%p229) target = $region29
    $region28: #{gpt_forward.21} parent=1 // pred_region
      %vm232 = vcmp.ge.s32.totalorder %v151, 0
      %vm233 = vcmp.ge.s32.totalorder %v152, 0
      %v234 = vsel %vm232, 1, 0
      %v235 = vsel %vm233, 1, 0
      %v236 = vcvt.s32.f32 %v234
      %v237 = vcvt.s32.f32 %v235
      %v238 = vld [vmem:[#allocation3] sm:$0xff]
      %v239 = vld [vmem:[#allocation3 + $0x8] sm:$0xff]
      %v240 = vld [vmem:[#allocation4] sm:$0xff]
      %v241 = vld [vmem:[#allocation4 + $0x8] sm:$0xff]
      %v242 = vlog2.pop %v240
      %v243 = vmul.f32 %v242, 0.6931472
      %v244 = vlog2.pop %v241
      %v245 = vmul.f32 %v244, 0.6931472
      %v246 = vadd.f32 %v238, %v243
      %v247 = vadd.f32 %v239, %v245
      %v248 = vld [vmem:[#allocation5] sm:$0xff]
      %v249 = vld [vmem:[#allocation5 + $0x8] sm:$0xff]
      %v250 = vsub.f32 %v246, %v248
      %v251 = vsub.f32 %v247, %v249
      %v252 = vmul.f32 %v250, %v236
      %v253 = vmul.f32 %v251, %v237
      %254 = vst.msk [vmem:[%s6] sm:$0xff] %vm202, %v252
      %255 = vst.msk [vmem:[%s6 + $0x8] sm:$0xff] %vm202, %v253
      %256 = vst.msk [vmem:[%s7] sm:$0xff] %vm202, %v236
      %257 = vst.msk [vmem:[%s7 + $0x8] sm:$0xff] %vm202, %v237
    $region29: #{gpt_forward.21} parent=1 // pred_fallthru
      _
    // Predicated region
    $region30: #{gpt_forward.21} parent=1 // pred_check
      _
    $region31: #{gpt_forward.21} parent=1 // pred_check_branch
      %259 = sbr.rel (0) target = $region33
    $region32: #{gpt_forward.21} parent=1 // pred_region
      %261 = vsyncadd [#allocation7], 0
      %s262 = sshll.u32 [#allocation6], 4
      %s263 = int_to_ptr.vmem [resolvable:$true] %s262
      %s264 = sshll.u32 %s5, 4
      %s265 = int_to_ptr.hbm [resolvable:$true] %s264
      %270 = dma.vmem_to_hbm [thread:$0]  %s263, 256, %s265, [#allocation7], 128, 128, 8
    $region33: #{gpt_forward.21} parent=1 // pred_fallthru
      _
    // Predicated region
    $region34: #{gpt_forward.21} parent=1 // pred_check
      _
    $region35: #{gpt_forward.21} parent=1 // pred_check_branch
      %272 = sbr.rel (0) target = $region37
    $region36: #{gpt_forward.21} parent=1 // pred_region
      _
    $region37: #{gpt_forward.21} parent=1 // pred_fallthru
      _
    // Predicated region
    $region38: #{gpt_forward.21} parent=1 // pred_check
      _
    $region39: #{gpt_forward.21} parent=1 // pred_check_branch
      %274 = sbr.rel (0) target = $region41
    $region40: #{gpt_forward.21} parent=1 // pred_region
      _
    $region41: #{gpt_forward.21} parent=1 // pred_fallthru
      _
    // Predicated region
    $region42: #{gpt_forward.21} parent=1 // pred_check
      _
    $region43: #{gpt_forward.21} parent=1 // pred_check_branch
      %276 = sbr.rel (0) target = $region45
    $region44: #{gpt_forward.21} parent=1 // pred_region
      %278 = dma.done [#allocation7], 256
    $region45: #{gpt_forward.21} parent=1 // pred_fallthru
      _
    // Predicated region
    $region46: #{gpt_forward.21} parent=1 // pred_check
      _
    $region47: #{gpt_forward.21} parent=1 // pred_check_branch
      %280 = sbr.rel (0) target = $region49
    $region48: #{gpt_forward.21} parent=1 // pred_region
      _
    $region49: #{gpt_forward.21} parent=1 // pred_fallthru
      _
    // Predicated region
    $region50: #{gpt_forward.21} parent=1 // pred_check
      _
    $region51: #{gpt_forward.21} parent=1 // pred_check_branch
      %282 = sbr.rel (0) target = $region53
    $region52: #{gpt_forward.21} parent=1 // pred_region
      _
    $region53: #{gpt_forward.21} parent=1 // pred_fallthru
      _
    %283 = vsyncpa [#allocation7], 1

</llo_original>
